<compile_context>
chip_gen: v5e
topology: v5e:2x2
jax: 0.10.0
libtpu: 0.0.40
codegen_flags: <defaults>
</compile_context>

<pallas_src>
import jax
import jax.numpy as jnp
from jax.experimental import pallas as pl
from jax.experimental.pallas import tpu as pltpu

VMEM = pltpu.MemorySpace.VMEM
F32 = jnp.float32


def _vmem_specs(n):
    return [pl.BlockSpec(memory_space=VMEM) for _ in range(n)]


# ----------------------- single fused Encoder kernel ------------------------
def encoder_kernel(xj_ref, xi_ref, pd_ref, adj_ref, mask_ref,
                   win_ref, bin_ref, wls_ref, wdst_ref,
                   wp1_ref, bp1_ref, wp2_ref, bp2_ref,
                   wa1_ref, ba1_ref, wa2_ref, ba2_ref,
                   wo1_ref, wo2_ref, bo_ref,
                   o_ref):
    adj = adj_ref[...]                       # [E, N1] one-hot of destination
    e = adj.shape[0]
    n1 = adj.shape[1]
    d = wdst_ref.shape[1]

    def mm(a, b):
        return jnp.dot(a, b, preferred_element_type=F32)

    # ---- in_enc: Linear + ReLU on the gathered raw rows (row-wise op, so
    #      identical to encoding nodes first and gathering afterwards) -------
    xj_e = jnp.maximum(mm(xj_ref[...], win_ref[...]) + bin_ref[...], 0.0)   # [2E, D]
    xi_e = jnp.maximum(mm(xi_ref[...], win_ref[...]) + bin_ref[...], 0.0)   # [E, D]

    # ---- PointTransformerConv bias-free projections (lin | lin_src fused) --
    ls = mm(xj_e, wls_ref[...])                            # [2E, 2D]
    xj_lin = ls[:, :d]                                     # self.lin(x_j)
    alpha_j = ls[:, d:]                                    # self.lin_src(x_j)
    alpha_i = mm(xi_e, wdst_ref[...])                      # [E, D] (shared by both passes)
    alpha_i2 = jnp.concatenate([alpha_i, alpha_i], axis=0)  # [2E, D]

    # ---- pos_nn: Linear -> ReLU -> Linear on (pos_i - pos_j) ---------------
    h = jnp.maximum(mm(pd_ref[...], wp1_ref[...]) + bp1_ref[...], 0.0)
    delta = mm(h, wp2_ref[...]) + bp2_ref[...]             # [2E, D]

    # ---- attn_nn: Linear -> ReLU -> Linear on (alpha_i - alpha_j + delta) --
    a = alpha_i2 - alpha_j + delta
    ha = jnp.maximum(mm(a, wa1_ref[...]) + ba1_ref[...], 0.0)
    alpha = mm(ha, wa2_ref[...]) + ba2_ref[...]            # [2E, D]

    val = xj_lin + delta                                   # [2E, D]
    neg_inf = jnp.float32(-1e30)

    def seg_softmax_aggregate(alpha_p, val_p):
        # per-destination, per-channel softmax (PyG semantics) + scatter-add,
        # with normalization applied once per destination after aggregation.
        rows = []
        for c in range(n1):                                # n1 static & small
            mask_c = adj[:, c:c + 1] > 0.5                 # [E, 1]
            rows.append(jnp.max(jnp.where(mask_c, alpha_p, neg_inf),
                                axis=0, keepdims=True))
        seg_max = jnp.concatenate(rows, axis=0)            # [N1, D]
        p = jnp.exp(alpha_p - mm(adj, seg_max))            # [E, D]
        seg_sum = jnp.einsum('ec,ed->cd', adj, p,
                             preferred_element_type=F32) + 1e-16          # [N1, D]
        num = jnp.einsum('ec,ed->cd', adj, p * val_p,
                         preferred_element_type=F32)       # scatter-add, [N1, D]
        out = num * pl.reciprocal(seg_sum, approx=True)
        return jnp.maximum(out, 0.0)                       # relu in get_clu

    xc = seg_softmax_aggregate(alpha[:e], val[:e])         # cur pass  [N1, D]
    xt = seg_softmax_aggregate(alpha[e:], val[e:])         # tar pass  [N1, D]

    # ---- out_enc: cat([xc, xt-xc]) @ W.T + b == xc@(W1-W2).T + xt@W2.T + b -
    y = mm(xc, wo1_ref[...]) + mm(xt, wo2_ref[...]) + bo_ref[...]
    o_ref[...] = jnp.maximum(y, 0.0) * mask_ref[...]


# ----------------------------- parameters -----------------------------------
def init_params(input_dim, output_dim, pos_dim, key):
    """PyTorch-native layouts: nn.Linear weight is [out_features, in_features]."""
    ks = jax.random.split(key, 16)
    s = 0.1
    nrm = lambda k, shp: (s * jax.random.normal(k, shp)).astype(jnp.float32)
    return {
        'w_in': nrm(ks[0], (output_dim, input_dim)),
        'b_in': nrm(ks[1], (output_dim,)),
        'w_lin': nrm(ks[2], (output_dim, output_dim)),
        'w_src': nrm(ks[3], (output_dim, output_dim)),
        'w_dst': nrm(ks[4], (output_dim, output_dim)),
        'wp1': nrm(ks[5], (output_dim, 2 * pos_dim)),
        'bp1': nrm(ks[6], (output_dim,)),
        'wp2': nrm(ks[7], (output_dim, output_dim)),
        'bp2': nrm(ks[8], (output_dim,)),
        'wa1': nrm(ks[9], (output_dim, output_dim)),
        'ba1': nrm(ks[10], (output_dim,)),
        'wa2': nrm(ks[11], (output_dim, output_dim)),
        'ba2': nrm(ks[12], (output_dim,)),
        'w_out': nrm(ks[13], (output_dim, 2 * output_dim)),
        'b_out': nrm(ks[14], (output_dim,)),
    }


def prepare_params(p):
    """One-time host-side prep: transpose to [in, out], fuse lin|lin_src,
    pre-combine out_enc's concat algebra. Done once, outside the kernel."""
    d = p['w_lin'].shape[0]
    w1, w2 = p['w_out'][:, :d], p['w_out'][:, d:]
    row = lambda b: b.reshape(1, -1)
    return {
        'win_t': p['w_in'].T, 'b_in': row(p['b_in']),
        'wls_t': jnp.concatenate([p['w_lin'].T, p['w_src'].T], axis=1),  # [D, 2D]
        'wdst_t': p['w_dst'].T,
        'wp1_t': p['wp1'].T, 'bp1': row(p['bp1']),
        'wp2_t': p['wp2'].T, 'bp2': row(p['bp2']),
        'wa1_t': p['wa1'].T, 'ba1': row(p['ba1']),
        'wa2_t': p['wa2'].T, 'ba2': row(p['ba2']),
        'wo1m2_t': (w1 - w2).T, 'wo2_t': w2.T, 'b_out': row(p['b_out']),
    }


# ----------------------------- Encoder forward -------------------------------
def encoder_forward(kp, x_cur, x_tar, pos_cur, pos_tar, cluster_mask,
                    l0_to_l1_edge_index, centers_index):
    src_idx = l0_to_l1_edge_index[0]        # [E] indices into l0 nodes
    dst_idx = l0_to_l1_edge_index[1]        # [E] indices into centers
    n1 = centers_index.shape[0]
    d = kp['wdst_t'].shape[1]

    # Host-side glue: raw-input row gathers + one-hot (tiny integer indexing).
    ctr_of_dst = centers_index[dst_idx]                                   # [E]
    xj_raw = jnp.concatenate([x_cur[src_idx], x_tar[src_idx]], axis=0)    # [2E, C]
    xi_raw = x_tar[ctr_of_dst]                                            # [E, C]
    pc = pos_tar[ctr_of_dst]                                              # [E, P]
    posi = jnp.concatenate([pc, pc], axis=-1)                             # [E, 2P]
    posj_cur = jnp.concatenate([pos_cur[src_idx], pos_tar[src_idx]], axis=-1)
    posj_tar = jnp.concatenate([pos_tar[src_idx], pos_tar[src_idx]], axis=-1)
    pd = jnp.concatenate([posi - posj_cur, posi - posj_tar], axis=0)      # [2E, 2P]
    adj = jax.nn.one_hot(dst_idx, n1, dtype=jnp.float32)                  # [E, N1]
    mask = cluster_mask.astype(jnp.float32).reshape(-1, 1)                # [N1, 1]

    args = (xj_raw, xi_raw, pd, adj, mask,
            kp['win_t'], kp['b_in'], kp['wls_t'], kp['wdst_t'],
            kp['wp1_t'], kp['bp1'], kp['wp2_t'], kp['bp2'],
            kp['wa1_t'], kp['ba1'], kp['wa2_t'], kp['ba2'],
            kp['wo1m2_t'], kp['wo2_t'], kp['b_out'])

    return pl.pallas_call(
        encoder_kernel,
        out_shape=jax.ShapeDtypeStruct((n1, d), jnp.float32),
        in_specs=_vmem_specs(len(args)),
        out_specs=pl.BlockSpec(memory_space=VMEM),
    )(*args)


# ------------------------------------ main -----------------------------------
if __name__ == "__main__":
    INPUT_DIM = 8
    OUTPUT_DIM = 32
    POS_DIM = 4
    N0 = 16          # number of l0 nodes
    N1 = 8           # number of cluster centers (l1 nodes)
    E = 32           # number of l0 -> l1 edges
    assert N0 % N1 == 0, "test harness assumes N1 divides N0"

    key = jax.random.PRNGKey(0)
    k1, k2, k3, k4, k5, k6, k7 = jax.random.split(key, 7)

    x_cur = jax.random.normal(k1, (N0, INPUT_DIM), dtype=jnp.float32)
    x_tar = jax.random.normal(k2, (N0, INPUT_DIM), dtype=jnp.float32)
    pos_cur = jax.random.normal(k3, (N0, POS_DIM), dtype=jnp.float32)
    pos_tar = jax.random.normal(k4, (N0, POS_DIM), dtype=jnp.float32)
    cluster_mask = jax.random.bernoulli(k5, p=0.75, shape=(N1,))
    src = jax.random.randint(k6, (E,), 0, N0, dtype=jnp.int32)
    dst = jax.random.randint(k7, (E,), 0, N1, dtype=jnp.int32)
    l0_to_l1_edge_index = jnp.stack([src, dst], axis=0)
    centers_index = jnp.arange(0, N0, N0 // N1, dtype=jnp.int32)   # [N1]

    params = init_params(INPUT_DIM, OUTPUT_DIM, POS_DIM, jax.random.PRNGKey(1))
    kparams = prepare_params(params)

    fwd = jax.jit(encoder_forward)
    out = fwd(kparams, x_cur, x_tar, pos_cur, pos_tar, cluster_mask,
              l0_to_l1_edge_index, centers_index)
    out = jax.block_until_ready(out)
    assert out.shape == (N1, OUTPUT_DIM)
    assert bool(jnp.all(jnp.isfinite(out)))
    print("KERNEL_OK")
</pallas_src>

<mosaic_0001>
module attributes {stable_mosaic.version = 11 : i64} {
  func.func @encoder_kernel(%arg0: memref<64x8xf32, #tpu.memory_space<vmem>>, %arg1: memref<32x8xf32, #tpu.memory_space<vmem>>, %arg2: memref<64x8xf32, #tpu.memory_space<vmem>>, %arg3: memref<32x8xf32, #tpu.memory_space<vmem>>, %arg4: memref<8x1xf32, #tpu.memory_space<vmem>>, %arg5: memref<8x32xf32, #tpu.memory_space<vmem>>, %arg6: memref<1x32xf32, #tpu.memory_space<vmem>>, %arg7: memref<32x64xf32, #tpu.memory_space<vmem>>, %arg8: memref<32x32xf32, #tpu.memory_space<vmem>>, %arg9: memref<8x32xf32, #tpu.memory_space<vmem>>, %arg10: memref<1x32xf32, #tpu.memory_space<vmem>>, %arg11: memref<32x32xf32, #tpu.memory_space<vmem>>, %arg12: memref<1x32xf32, #tpu.memory_space<vmem>>, %arg13: memref<32x32xf32, #tpu.memory_space<vmem>>, %arg14: memref<1x32xf32, #tpu.memory_space<vmem>>, %arg15: memref<32x32xf32, #tpu.memory_space<vmem>>, %arg16: memref<1x32xf32, #tpu.memory_space<vmem>>, %arg17: memref<32x32xf32, #tpu.memory_space<vmem>>, %arg18: memref<32x32xf32, #tpu.memory_space<vmem>>, %arg19: memref<1x32xf32, #tpu.memory_space<vmem>>, %arg20: memref<8x32xf32, #tpu.memory_space<vmem>>) attributes {dimension_semantics = [], scalar_prefetch = 0 : i64, scratch_operands = 0 : i64, tpu.core_type = #tpu.core_type<tc>} {
    %c0 = arith.constant 0 : index
    %c0_0 = arith.constant 0 : index
    %0 = vector.load %arg3[%c0, %c0_0] : memref<32x8xf32, #tpu.memory_space<vmem>>, vector<32x8xf32>
    %c0_1 = arith.constant 0 : index
    %c0_2 = arith.constant 0 : index
    %1 = vector.load %arg0[%c0_1, %c0_2] : memref<64x8xf32, #tpu.memory_space<vmem>>, vector<64x8xf32>
    %c0_3 = arith.constant 0 : index
    %c0_4 = arith.constant 0 : index
    %2 = vector.load %arg5[%c0_3, %c0_4] : memref<8x32xf32, #tpu.memory_space<vmem>>, vector<8x32xf32>
    %cst = arith.constant dense<0.000000e+00> : vector<64x32xf32>
    %3 = tpu.matmul %1, %2, %cst {dimension_numbers = #tpu.dot_dimension_numbers<[1], [0], [0], [1], [0, 0, 1, 1], [], []>} : vector<64x8xf32>, vector<8x32xf32>, vector<64x32xf32> -> vector<64x32xf32>
    %c0_5 = arith.constant 0 : index
    %c0_6 = arith.constant 0 : index
    %4 = vector.load %arg6[%c0_5, %c0_6] : memref<1x32xf32, #tpu.memory_space<vmem>>, vector<1x32xf32>
    %5 = vector.broadcast %4 : vector<1x32xf32> to vector<64x32xf32>
    %6 = arith.addf %3, %5 : vector<64x32xf32>
    %cst_7 = arith.constant 0.000000e+00 : f32
    %7 = vector.broadcast %cst_7 : f32 to vector<64x32xf32>
    %8 = arith.maximumf %6, %7 : vector<64x32xf32>
    %c0_8 = arith.constant 0 : index
    %c0_9 = arith.constant 0 : index
    %9 = vector.load %arg1[%c0_8, %c0_9] : memref<32x8xf32, #tpu.memory_space<vmem>>, vector<32x8xf32>
    %c0_10 = arith.constant 0 : index
    %c0_11 = arith.constant 0 : index
    %10 = vector.load %arg5[%c0_10, %c0_11] : memref<8x32xf32, #tpu.memory_space<vmem>>, vector<8x32xf32>
    %cst_12 = arith.constant dense<0.000000e+00> : vector<32x32xf32>
    %11 = tpu.matmul %9, %10, %cst_12 {dimension_numbers = #tpu.dot_dimension_numbers<[1], [0], [0], [1], [0, 0, 1, 1], [], []>} : vector<32x8xf32>, vector<8x32xf32>, vector<32x32xf32> -> vector<32x32xf32>
    %c0_13 = arith.constant 0 : index
    %c0_14 = arith.constant 0 : index
    %12 = vector.load %arg6[%c0_13, %c0_14] : memref<1x32xf32, #tpu.memory_space<vmem>>, vector<1x32xf32>
    %13 = vector.broadcast %12 : vector<1x32xf32> to vector<32x32xf32>
    %14 = arith.addf %11, %13 : vector<32x32xf32>
    %cst_15 = arith.constant 0.000000e+00 : f32
    %15 = vector.broadcast %cst_15 : f32 to vector<32x32xf32>
    %16 = arith.maximumf %14, %15 : vector<32x32xf32>
    %c0_16 = arith.constant 0 : index
    %c0_17 = arith.constant 0 : index
    %17 = vector.load %arg7[%c0_16, %c0_17] : memref<32x64xf32, #tpu.memory_space<vmem>>, vector<32x64xf32>
    %cst_18 = arith.constant dense<0.000000e+00> : vector<64x64xf32>
    %18 = tpu.matmul %8, %17, %cst_18 {dimension_numbers = #tpu.dot_dimension_numbers<[1], [0], [0], [1], [0, 0, 1, 1], [], []>} : vector<64x32xf32>, vector<32x64xf32>, vector<64x64xf32> -> vector<64x64xf32>
    %19 = vector.extract_strided_slice %18 {offsets = [0, 0], sizes = [64, 32], strides = [1, 1]} : vector<64x64xf32> to vector<64x32xf32>
    %20 = vector.extract_strided_slice %18 {offsets = [0, 32], sizes = [64, 32], strides = [1, 1]} : vector<64x64xf32> to vector<64x32xf32>
    %c0_19 = arith.constant 0 : index
    %c0_20 = arith.constant 0 : index
    %21 = vector.load %arg8[%c0_19, %c0_20] : memref<32x32xf32, #tpu.memory_space<vmem>>, vector<32x32xf32>
    %cst_21 = arith.constant dense<0.000000e+00> : vector<32x32xf32>
    %22 = tpu.matmul %16, %21, %cst_21 {dimension_numbers = #tpu.dot_dimension_numbers<[1], [0], [0], [1], [0, 0, 1, 1], [], []>} : vector<32x32xf32>, vector<32x32xf32>, vector<32x32xf32> -> vector<32x32xf32>
    %23 = tpu.concatenate %22, %22 in 0 : vector<32x32xf32>, vector<32x32xf32> -> vector<64x32xf32>
    %c0_22 = arith.constant 0 : index
    %c0_23 = arith.constant 0 : index
    %24 = vector.load %arg2[%c0_22, %c0_23] : memref<64x8xf32, #tpu.memory_space<vmem>>, vector<64x8xf32>
    %c0_24 = arith.constant 0 : index
    %c0_25 = arith.constant 0 : index
    %25 = vector.load %arg9[%c0_24, %c0_25] : memref<8x32xf32, #tpu.memory_space<vmem>>, vector<8x32xf32>
    %cst_26 = arith.constant dense<0.000000e+00> : vector<64x32xf32>
    %26 = tpu.matmul %24, %25, %cst_26 {dimension_numbers = #tpu.dot_dimension_numbers<[1], [0], [0], [1], [0, 0, 1, 1], [], []>} : vector<64x8xf32>, vector<8x32xf32>, vector<64x32xf32> -> vector<64x32xf32>
    %c0_27 = arith.constant 0 : index
    %c0_28 = arith.constant 0 : index
    %27 = vector.load %arg10[%c0_27, %c0_28] : memref<1x32xf32, #tpu.memory_space<vmem>>, vector<1x32xf32>
    %28 = vector.broadcast %27 : vector<1x32xf32> to vector<64x32xf32>
    %29 = arith.addf %26, %28 : vector<64x32xf32>
    %cst_29 = arith.constant 0.000000e+00 : f32
    %30 = vector.broadcast %cst_29 : f32 to vector<64x32xf32>
    %31 = arith.maximumf %29, %30 : vector<64x32xf32>
    %c0_30 = arith.constant 0 : index
    %c0_31 = arith.constant 0 : index
    %32 = vector.load %arg11[%c0_30, %c0_31] : memref<32x32xf32, #tpu.memory_space<vmem>>, vector<32x32xf32>
    %cst_32 = arith.constant dense<0.000000e+00> : vector<64x32xf32>
    %33 = tpu.matmul %31, %32, %cst_32 {dimension_numbers = #tpu.dot_dimension_numbers<[1], [0], [0], [1], [0, 0, 1, 1], [], []>} : vector<64x32xf32>, vector<32x32xf32>, vector<64x32xf32> -> vector<64x32xf32>
    %c0_33 = arith.constant 0 : index
    %c0_34 = arith.constant 0 : index
    %34 = vector.load %arg12[%c0_33, %c0_34] : memref<1x32xf32, #tpu.memory_space<vmem>>, vector<1x32xf32>
    %35 = vector.broadcast %34 : vector<1x32xf32> to vector<64x32xf32>
    %36 = arith.addf %33, %35 : vector<64x32xf32>
    %37 = arith.subf %23, %20 : vector<64x32xf32>
    %38 = arith.addf %37, %36 : vector<64x32xf32>
    %c0_35 = arith.constant 0 : index
    %c0_36 = arith.constant 0 : index
    %39 = vector.load %arg13[%c0_35, %c0_36] : memref<32x32xf32, #tpu.memory_space<vmem>>, vector<32x32xf32>
    %cst_37 = arith.constant dense<0.000000e+00> : vector<64x32xf32>
    %40 = tpu.matmul %38, %39, %cst_37 {dimension_numbers = #tpu.dot_dimension_numbers<[1], [0], [0], [1], [0, 0, 1, 1], [], []>} : vector<64x32xf32>, vector<32x32xf32>, vector<64x32xf32> -> vector<64x32xf32>
    %c0_38 = arith.constant 0 : index
    %c0_39 = arith.constant 0 : index
    %41 = vector.load %arg14[%c0_38, %c0_39] : memref<1x32xf32, #tpu.memory_space<vmem>>, vector<1x32xf32>
    %42 = vector.broadcast %41 : vector<1x32xf32> to vector<64x32xf32>
    %43 = arith.addf %40, %42 : vector<64x32xf32>
    %cst_40 = arith.constant 0.000000e+00 : f32
    %44 = vector.broadcast %cst_40 : f32 to vector<64x32xf32>
    %45 = arith.maximumf %43, %44 : vector<64x32xf32>
    %c0_41 = arith.constant 0 : index
    %c0_42 = arith.constant 0 : index
    %46 = vector.load %arg15[%c0_41, %c0_42] : memref<32x32xf32, #tpu.memory_space<vmem>>, vector<32x32xf32>
    %cst_43 = arith.constant dense<0.000000e+00> : vector<64x32xf32>
    %47 = tpu.matmul %45, %46, %cst_43 {dimension_numbers = #tpu.dot_dimension_numbers<[1], [0], [0], [1], [0, 0, 1, 1], [], []>} : vector<64x32xf32>, vector<32x32xf32>, vector<64x32xf32> -> vector<64x32xf32>
    %c0_44 = arith.constant 0 : index
    %c0_45 = arith.constant 0 : index
    %48 = vector.load %arg16[%c0_44, %c0_45] : memref<1x32xf32, #tpu.memory_space<vmem>>, vector<1x32xf32>
    %49 = vector.broadcast %48 : vector<1x32xf32> to vector<64x32xf32>
    %50 = arith.addf %47, %49 : vector<64x32xf32>
    %51 = arith.addf %19, %36 : vector<64x32xf32>
    %52 = vector.extract_strided_slice %50 {offsets = [0, 0], sizes = [32, 32], strides = [1, 1]} : vector<64x32xf32> to vector<32x32xf32>
    %53 = vector.extract_strided_slice %51 {offsets = [0, 0], sizes = [32, 32], strides = [1, 1]} : vector<64x32xf32> to vector<32x32xf32>
    %54 = vector.extract_strided_slice %0 {offsets = [0, 0], sizes = [32, 1], strides = [1, 1]} : vector<32x8xf32> to vector<32x1xf32>
    %cst_46 = arith.constant 5.000000e-01 : f32
    %55 = vector.broadcast %cst_46 : f32 to vector<32x1xf32>
    %56 = arith.cmpf ogt, %54, %55 : vector<32x1xf32>
    %cst_47 = arith.constant -1.000000e+30 : f32
    %57 = vector.shape_cast %56 : vector<32x1xi1> to vector<32x1xi1>
    %58 = vector.broadcast %57 : vector<32x1xi1> to vector<32x32xi1>
    %59 = vector.broadcast %cst_47 : f32 to vector<32x32xf32>
    %60 = arith.select %58, %52, %59 : vector<32x32xi1>, vector<32x32xf32>
    %cst_48 = arith.constant dense<0xFF800000> : vector<32xf32>
    %61 = vector.multi_reduction <maximumf>, %60, %cst_48 [0] : vector<32x32xf32> to vector<32xf32>
    %62 = vector.shape_cast %61 : vector<32xf32> to vector<1x32xf32>
    %63 = vector.extract_strided_slice %0 {offsets = [0, 1], sizes = [32, 1], strides = [1, 1]} : vector<32x8xf32> to vector<32x1xf32>
    %cst_49 = arith.constant 5.000000e-01 : f32
    %64 = vector.broadcast %cst_49 : f32 to vector<32x1xf32>
    %65 = arith.cmpf ogt, %63, %64 : vector<32x1xf32>
    %cst_50 = arith.constant -1.000000e+30 : f32
    %66 = vector.shape_cast %65 : vector<32x1xi1> to vector<32x1xi1>
    %67 = vector.broadcast %66 : vector<32x1xi1> to vector<32x32xi1>
    %68 = vector.broadcast %cst_50 : f32 to vector<32x32xf32>
    %69 = arith.select %67, %52, %68 : vector<32x32xi1>, vector<32x32xf32>
    %cst_51 = arith.constant dense<0xFF800000> : vector<32xf32>
    %70 = vector.multi_reduction <maximumf>, %69, %cst_51 [0] : vector<32x32xf32> to vector<32xf32>
    %71 = vector.shape_cast %70 : vector<32xf32> to vector<1x32xf32>
    %72 = vector.extract_strided_slice %0 {offsets = [0, 2], sizes = [32, 1], strides = [1, 1]} : vector<32x8xf32> to vector<32x1xf32>
    %cst_52 = arith.constant 5.000000e-01 : f32
    %73 = vector.broadcast %cst_52 : f32 to vector<32x1xf32>
    %74 = arith.cmpf ogt, %72, %73 : vector<32x1xf32>
    %cst_53 = arith.constant -1.000000e+30 : f32
    %75 = vector.shape_cast %74 : vector<32x1xi1> to vector<32x1xi1>
    %76 = vector.broadcast %75 : vector<32x1xi1> to vector<32x32xi1>
    %77 = vector.broadcast %cst_53 : f32 to vector<32x32xf32>
    %78 = arith.select %76, %52, %77 : vector<32x32xi1>, vector<32x32xf32>
    %cst_54 = arith.constant dense<0xFF800000> : vector<32xf32>
    %79 = vector.multi_reduction <maximumf>, %78, %cst_54 [0] : vector<32x32xf32> to vector<32xf32>
    %80 = vector.shape_cast %79 : vector<32xf32> to vector<1x32xf32>
    %81 = vector.extract_strided_slice %0 {offsets = [0, 3], sizes = [32, 1], strides = [1, 1]} : vector<32x8xf32> to vector<32x1xf32>
    %cst_55 = arith.constant 5.000000e-01 : f32
    %82 = vector.broadcast %cst_55 : f32 to vector<32x1xf32>
    %83 = arith.cmpf ogt, %81, %82 : vector<32x1xf32>
    %cst_56 = arith.constant -1.000000e+30 : f32
    %84 = vector.shape_cast %83 : vector<32x1xi1> to vector<32x1xi1>
    %85 = vector.broadcast %84 : vector<32x1xi1> to vector<32x32xi1>
    %86 = vector.broadcast %cst_56 : f32 to vector<32x32xf32>
    %87 = arith.select %85, %52, %86 : vector<32x32xi1>, vector<32x32xf32>
    %cst_57 = arith.constant dense<0xFF800000> : vector<32xf32>
    %88 = vector.multi_reduction <maximumf>, %87, %cst_57 [0] : vector<32x32xf32> to vector<32xf32>
    %89 = vector.shape_cast %88 : vector<32xf32> to vector<1x32xf32>
    %90 = vector.extract_strided_slice %0 {offsets = [0, 4], sizes = [32, 1], strides = [1, 1]} : vector<32x8xf32> to vector<32x1xf32>
    %cst_58 = arith.constant 5.000000e-01 : f32
    %91 = vector.broadcast %cst_58 : f32 to vector<32x1xf32>
    %92 = arith.cmpf ogt, %90, %91 : vector<32x1xf32>
    %cst_59 = arith.constant -1.000000e+30 : f32
    %93 = vector.shape_cast %92 : vector<32x1xi1> to vector<32x1xi1>
    %94 = vector.broadcast %93 : vector<32x1xi1> to vector<32x32xi1>
    %95 = vector.broadcast %cst_59 : f32 to vector<32x32xf32>
    %96 = arith.select %94, %52, %95 : vector<32x32xi1>, vector<32x32xf32>
    %cst_60 = arith.constant dense<0xFF800000> : vector<32xf32>
    %97 = vector.multi_reduction <maximumf>, %96, %cst_60 [0] : vector<32x32xf32> to vector<32xf32>
    %98 = vector.shape_cast %97 : vector<32xf32> to vector<1x32xf32>
    %99 = vector.extract_strided_slice %0 {offsets = [0, 5], sizes = [32, 1], strides = [1, 1]} : vector<32x8xf32> to vector<32x1xf32>
    %cst_61 = arith.constant 5.000000e-01 : f32
    %100 = vector.broadcast %cst_61 : f32 to vector<32x1xf32>
    %101 = arith.cmpf ogt, %99, %100 : vector<32x1xf32>
    %cst_62 = arith.constant -1.000000e+30 : f32
    %102 = vector.shape_cast %101 : vector<32x1xi1> to vector<32x1xi1>
    %103 = vector.broadcast %102 : vector<32x1xi1> to vector<32x32xi1>
    %104 = vector.broadcast %cst_62 : f32 to vector<32x32xf32>
    %105 = arith.select %103, %52, %104 : vector<32x32xi1>, vector<32x32xf32>
    %cst_63 = arith.constant dense<0xFF800000> : vector<32xf32>
    %106 = vector.multi_reduction <maximumf>, %105, %cst_63 [0] : vector<32x32xf32> to vector<32xf32>
    %107 = vector.shape_cast %106 : vector<32xf32> to vector<1x32xf32>
    %108 = vector.extract_strided_slice %0 {offsets = [0, 6], sizes = [32, 1], strides = [1, 1]} : vector<32x8xf32> to vector<32x1xf32>
    %cst_64 = arith.constant 5.000000e-01 : f32
    %109 = vector.broadcast %cst_64 : f32 to vector<32x1xf32>
    %110 = arith.cmpf ogt, %108, %109 : vector<32x1xf32>
    %cst_65 = arith.constant -1.000000e+30 : f32
    %111 = vector.shape_cast %110 : vector<32x1xi1> to vector<32x1xi1>
    %112 = vector.broadcast %111 : vector<32x1xi1> to vector<32x32xi1>
    %113 = vector.broadcast %cst_65 : f32 to vector<32x32xf32>
    %114 = arith.select %112, %52, %113 : vector<32x32xi1>, vector<32x32xf32>
    %cst_66 = arith.constant dense<0xFF800000> : vector<32xf32>
    %115 = vector.multi_reduction <maximumf>, %114, %cst_66 [0] : vector<32x32xf32> to vector<32xf32>
    %116 = vector.shape_cast %115 : vector<32xf32> to vector<1x32xf32>
    %117 = vector.extract_strided_slice %0 {offsets = [0, 7], sizes = [32, 1], strides = [1, 1]} : vector<32x8xf32> to vector<32x1xf32>
    %cst_67 = arith.constant 5.000000e-01 : f32
    %118 = vector.broadcast %cst_67 : f32 to vector<32x1xf32>
    %119 = arith.cmpf ogt, %117, %118 : vector<32x1xf32>
    %cst_68 = arith.constant -1.000000e+30 : f32
    %120 = vector.shape_cast %119 : vector<32x1xi1> to vector<32x1xi1>
    %121 = vector.broadcast %120 : vector<32x1xi1> to vector<32x32xi1>
    %122 = vector.broadcast %cst_68 : f32 to vector<32x32xf32>
    %123 = arith.select %121, %52, %122 : vector<32x32xi1>, vector<32x32xf32>
    %cst_69 = arith.constant dense<0xFF800000> : vector<32xf32>
    %124 = vector.multi_reduction <maximumf>, %123, %cst_69 [0] : vector<32x32xf32> to vector<32xf32>
    %125 = vector.shape_cast %124 : vector<32xf32> to vector<1x32xf32>
    %126 = tpu.concatenate %62, %71, %80, %89, %98, %107, %116, %125 in 0 : vector<1x32xf32>, vector<1x32xf32>, vector<1x32xf32>, vector<1x32xf32>, vector<1x32xf32>, vector<1x32xf32>, vector<1x32xf32>, vector<1x32xf32> -> vector<8x32xf32>
    %cst_70 = arith.constant dense<0.000000e+00> : vector<32x32xf32>
    %127 = tpu.matmul %0, %126, %cst_70 {dimension_numbers = #tpu.dot_dimension_numbers<[1], [0], [0], [1], [0, 0, 1, 1], [], []>} : vector<32x8xf32>, vector<8x32xf32>, vector<32x32xf32> -> vector<32x32xf32>
    %128 = arith.subf %52, %127 : vector<32x32xf32>
    %129 = math.exp %128 : vector<32x32xf32>
    "tpu.trace_start"() <{level = 10 : i32, message = "ec,ed->cd"}> : () -> ()
    %cst_71 = arith.constant dense<0.000000e+00> : vector<8x32xf32>
    %130 = tpu.matmul %0, %129, %cst_71 {dimension_numbers = #tpu.dot_dimension_numbers<[0], [0], [1], [1], [0, 1, 1, 1], [], []>} : vector<32x8xf32>, vector<32x32xf32>, vector<8x32xf32> -> vector<8x32xf32>
    "tpu.trace_stop"() : () -> ()
    %cst_72 = arith.constant 1.000000e-16 : f32
    %131 = vector.broadcast %cst_72 : f32 to vector<8x32xf32>
    %132 = arith.addf %130, %131 : vector<8x32xf32>
    %133 = arith.mulf %129, %53 : vector<32x32xf32>
    "tpu.trace_start"() <{level = 10 : i32, message = "ec,ed->cd"}> : () -> ()
    %cst_73 = arith.constant dense<0.000000e+00> : vector<8x32xf32>
    %134 = tpu.matmul %0, %133, %cst_73 {dimension_numbers = #tpu.dot_dimension_numbers<[0], [0], [1], [1], [0, 1, 1, 1], [], []>} : vector<32x8xf32>, vector<32x32xf32>, vector<8x32xf32> -> vector<8x32xf32>
    "tpu.trace_stop"() : () -> ()
    %135 = tpu.reciprocal %132 {approx = true} : vector<8x32xf32> -> vector<8x32xf32>
    %136 = arith.mulf %134, %135 : vector<8x32xf32>
    %cst_74 = arith.constant 0.000000e+00 : f32
    %137 = vector.broadcast %cst_74 : f32 to vector<8x32xf32>
    %138 = arith.maximumf %136, %137 : vector<8x32xf32>
    %139 = vector.extract_strided_slice %50 {offsets = [32, 0], sizes = [32, 32], strides = [1, 1]} : vector<64x32xf32> to vector<32x32xf32>
    %140 = vector.extract_strided_slice %51 {offsets = [32, 0], sizes = [32, 32], strides = [1, 1]} : vector<64x32xf32> to vector<32x32xf32>
    %141 = vector.extract_strided_slice %0 {offsets = [0, 0], sizes = [32, 1], strides = [1, 1]} : vector<32x8xf32> to vector<32x1xf32>
    %cst_75 = arith.constant 5.000000e-01 : f32
    %142 = vector.broadcast %cst_75 : f32 to vector<32x1xf32>
    %143 = arith.cmpf ogt, %141, %142 : vector<32x1xf32>
    %cst_76 = arith.constant -1.000000e+30 : f32
    %144 = vector.shape_cast %143 : vector<32x1xi1> to vector<32x1xi1>
    %145 = vector.broadcast %144 : vector<32x1xi1> to vector<32x32xi1>
    %146 = vector.broadcast %cst_76 : f32 to vector<32x32xf32>
    %147 = arith.select %145, %139, %146 : vector<32x32xi1>, vector<32x32xf32>
    %cst_77 = arith.constant dense<0xFF800000> : vector<32xf32>
    %148 = vector.multi_reduction <maximumf>, %147, %cst_77 [0] : vector<32x32xf32> to vector<32xf32>
    %149 = vector.shape_cast %148 : vector<32xf32> to vector<1x32xf32>
    %150 = vector.extract_strided_slice %0 {offsets = [0, 1], sizes = [32, 1], strides = [1, 1]} : vector<32x8xf32> to vector<32x1xf32>
    %cst_78 = arith.constant 5.000000e-01 : f32
    %151 = vector.broadcast %cst_78 : f32 to vector<32x1xf32>
    %152 = arith.cmpf ogt, %150, %151 : vector<32x1xf32>
    %cst_79 = arith.constant -1.000000e+30 : f32
    %153 = vector.shape_cast %152 : vector<32x1xi1> to vector<32x1xi1>
    %154 = vector.broadcast %153 : vector<32x1xi1> to vector<32x32xi1>
    %155 = vector.broadcast %cst_79 : f32 to vector<32x32xf32>
    %156 = arith.select %154, %139, %155 : vector<32x32xi1>, vector<32x32xf32>
    %cst_80 = arith.constant dense<0xFF800000> : vector<32xf32>
    %157 = vector.multi_reduction <maximumf>, %156, %cst_80 [0] : vector<32x32xf32> to vector<32xf32>
    %158 = vector.shape_cast %157 : vector<32xf32> to vector<1x32xf32>
    %159 = vector.extract_strided_slice %0 {offsets = [0, 2], sizes = [32, 1], strides = [1, 1]} : vector<32x8xf32> to vector<32x1xf32>
    %cst_81 = arith.constant 5.000000e-01 : f32
    %160 = vector.broadcast %cst_81 : f32 to vector<32x1xf32>
    %161 = arith.cmpf ogt, %159, %160 : vector<32x1xf32>
    %cst_82 = arith.constant -1.000000e+30 : f32
    %162 = vector.shape_cast %161 : vector<32x1xi1> to vector<32x1xi1>
    %163 = vector.broadcast %162 : vector<32x1xi1> to vector<32x32xi1>
    %164 = vector.broadcast %cst_82 : f32 to vector<32x32xf32>
    %165 = arith.select %163, %139, %164 : vector<32x32xi1>, vector<32x32xf32>
    %cst_83 = arith.constant dense<0xFF800000> : vector<32xf32>
    %166 = vector.multi_reduction <maximumf>, %165, %cst_83 [0] : vector<32x32xf32> to vector<32xf32>
    %167 = vector.shape_cast %166 : vector<32xf32> to vector<1x32xf32>
    %168 = vector.extract_strided_slice %0 {offsets = [0, 3], sizes = [32, 1], strides = [1, 1]} : vector<32x8xf32> to vector<32x1xf32>
    %cst_84 = arith.constant 5.000000e-01 : f32
    %169 = vector.broadcast %cst_84 : f32 to vector<32x1xf32>
    %170 = arith.cmpf ogt, %168, %169 : vector<32x1xf32>
    %cst_85 = arith.constant -1.000000e+30 : f32
    %171 = vector.shape_cast %170 : vector<32x1xi1> to vector<32x1xi1>
    %172 = vector.broadcast %171 : vector<32x1xi1> to vector<32x32xi1>
    %173 = vector.broadcast %cst_85 : f32 to vector<32x32xf32>
    %174 = arith.select %172, %139, %173 : vector<32x32xi1>, vector<32x32xf32>
    %cst_86 = arith.constant dense<0xFF800000> : vector<32xf32>
    %175 = vector.multi_reduction <maximumf>, %174, %cst_86 [0] : vector<32x32xf32> to vector<32xf32>
    %176 = vector.shape_cast %175 : vector<32xf32> to vector<1x32xf32>
    %177 = vector.extract_strided_slice %0 {offsets = [0, 4], sizes = [32, 1], strides = [1, 1]} : vector<32x8xf32> to vector<32x1xf32>
    %cst_87 = arith.constant 5.000000e-01 : f32
    %178 = vector.broadcast %cst_87 : f32 to vector<32x1xf32>
    %179 = arith.cmpf ogt, %177, %178 : vector<32x1xf32>
    %cst_88 = arith.constant -1.000000e+30 : f32
    %180 = vector.shape_cast %179 : vector<32x1xi1> to vector<32x1xi1>
    %181 = vector.broadcast %180 : vector<32x1xi1> to vector<32x32xi1>
    %182 = vector.broadcast %cst_88 : f32 to vector<32x32xf32>
    %183 = arith.select %181, %139, %182 : vector<32x32xi1>, vector<32x32xf32>
    %cst_89 = arith.constant dense<0xFF800000> : vector<32xf32>
    %184 = vector.multi_reduction <maximumf>, %183, %cst_89 [0] : vector<32x32xf32> to vector<32xf32>
    %185 = vector.shape_cast %184 : vector<32xf32> to vector<1x32xf32>
    %186 = vector.extract_strided_slice %0 {offsets = [0, 5], sizes = [32, 1], strides = [1, 1]} : vector<32x8xf32> to vector<32x1xf32>
    %cst_90 = arith.constant 5.000000e-01 : f32
    %187 = vector.broadcast %cst_90 : f32 to vector<32x1xf32>
    %188 = arith.cmpf ogt, %186, %187 : vector<32x1xf32>
    %cst_91 = arith.constant -1.000000e+30 : f32
    %189 = vector.shape_cast %188 : vector<32x1xi1> to vector<32x1xi1>
    %190 = vector.broadcast %189 : vector<32x1xi1> to vector<32x32xi1>
    %191 = vector.broadcast %cst_91 : f32 to vector<32x32xf32>
    %192 = arith.select %190, %139, %191 : vector<32x32xi1>, vector<32x32xf32>
    %cst_92 = arith.constant dense<0xFF800000> : vector<32xf32>
    %193 = vector.multi_reduction <maximumf>, %192, %cst_92 [0] : vector<32x32xf32> to vector<32xf32>
    %194 = vector.shape_cast %193 : vector<32xf32> to vector<1x32xf32>
    %195 = vector.extract_strided_slice %0 {offsets = [0, 6], sizes = [32, 1], strides = [1, 1]} : vector<32x8xf32> to vector<32x1xf32>
    %cst_93 = arith.constant 5.000000e-01 : f32
    %196 = vector.broadcast %cst_93 : f32 to vector<32x1xf32>
    %197 = arith.cmpf ogt, %195, %196 : vector<32x1xf32>
    %cst_94 = arith.constant -1.000000e+30 : f32
    %198 = vector.shape_cast %197 : vector<32x1xi1> to vector<32x1xi1>
    %199 = vector.broadcast %198 : vector<32x1xi1> to vector<32x32xi1>
    %200 = vector.broadcast %cst_94 : f32 to vector<32x32xf32>
    %201 = arith.select %199, %139, %200 : vector<32x32xi1>, vector<32x32xf32>
    %cst_95 = arith.constant dense<0xFF800000> : vector<32xf32>
    %202 = vector.multi_reduction <maximumf>, %201, %cst_95 [0] : vector<32x32xf32> to vector<32xf32>
    %203 = vector.shape_cast %202 : vector<32xf32> to vector<1x32xf32>
    %204 = vector.extract_strided_slice %0 {offsets = [0, 7], sizes = [32, 1], strides = [1, 1]} : vector<32x8xf32> to vector<32x1xf32>
    %cst_96 = arith.constant 5.000000e-01 : f32
    %205 = vector.broadcast %cst_96 : f32 to vector<32x1xf32>
    %206 = arith.cmpf ogt, %204, %205 : vector<32x1xf32>
    %cst_97 = arith.constant -1.000000e+30 : f32
    %207 = vector.shape_cast %206 : vector<32x1xi1> to vector<32x1xi1>
    %208 = vector.broadcast %207 : vector<32x1xi1> to vector<32x32xi1>
    %209 = vector.broadcast %cst_97 : f32 to vector<32x32xf32>
    %210 = arith.select %208, %139, %209 : vector<32x32xi1>, vector<32x32xf32>
    %cst_98 = arith.constant dense<0xFF800000> : vector<32xf32>
    %211 = vector.multi_reduction <maximumf>, %210, %cst_98 [0] : vector<32x32xf32> to vector<32xf32>
    %212 = vector.shape_cast %211 : vector<32xf32> to vector<1x32xf32>
    %213 = tpu.concatenate %149, %158, %167, %176, %185, %194, %203, %212 in 0 : vector<1x32xf32>, vector<1x32xf32>, vector<1x32xf32>, vector<1x32xf32>, vector<1x32xf32>, vector<1x32xf32>, vector<1x32xf32>, vector<1x32xf32> -> vector<8x32xf32>
    %cst_99 = arith.constant dense<0.000000e+00> : vector<32x32xf32>
    %214 = tpu.matmul %0, %213, %cst_99 {dimension_numbers = #tpu.dot_dimension_numbers<[1], [0], [0], [1], [0, 0, 1, 1], [], []>} : vector<32x8xf32>, vector<8x32xf32>, vector<32x32xf32> -> vector<32x32xf32>
    %215 = arith.subf %139, %214 : vector<32x32xf32>
    %216 = math.exp %215 : vector<32x32xf32>
    "tpu.trace_start"() <{level = 10 : i32, message = "ec,ed->cd"}> : () -> ()
    %cst_100 = arith.constant dense<0.000000e+00> : vector<8x32xf32>
    %217 = tpu.matmul %0, %216, %cst_100 {dimension_numbers = #tpu.dot_dimension_numbers<[0], [0], [1], [1], [0, 1, 1, 1], [], []>} : vector<32x8xf32>, vector<32x32xf32>, vector<8x32xf32> -> vector<8x32xf32>
    "tpu.trace_stop"() : () -> ()
    %cst_101 = arith.constant 1.000000e-16 : f32
    %218 = vector.broadcast %cst_101 : f32 to vector<8x32xf32>
    %219 = arith.addf %217, %218 : vector<8x32xf32>
    %220 = arith.mulf %216, %140 : vector<32x32xf32>
    "tpu.trace_start"() <{level = 10 : i32, message = "ec,ed->cd"}> : () -> ()
    %cst_102 = arith.constant dense<0.000000e+00> : vector<8x32xf32>
    %221 = tpu.matmul %0, %220, %cst_102 {dimension_numbers = #tpu.dot_dimension_numbers<[0], [0], [1], [1], [0, 1, 1, 1], [], []>} : vector<32x8xf32>, vector<32x32xf32>, vector<8x32xf32> -> vector<8x32xf32>
    "tpu.trace_stop"() : () -> ()
    %222 = tpu.reciprocal %219 {approx = true} : vector<8x32xf32> -> vector<8x32xf32>
    %223 = arith.mulf %221, %222 : vector<8x32xf32>
    %cst_103 = arith.constant 0.000000e+00 : f32
    %224 = vector.broadcast %cst_103 : f32 to vector<8x32xf32>
    %225 = arith.maximumf %223, %224 : vector<8x32xf32>
    %c0_104 = arith.constant 0 : index
    %c0_105 = arith.constant 0 : index
    %226 = vector.load %arg17[%c0_104, %c0_105] : memref<32x32xf32, #tpu.memory_space<vmem>>, vector<32x32xf32>
    %cst_106 = arith.constant dense<0.000000e+00> : vector<8x32xf32>
    %227 = tpu.matmul %138, %226, %cst_106 {dimension_numbers = #tpu.dot_dimension_numbers<[1], [0], [0], [1], [0, 0, 1, 1], [], []>} : vector<8x32xf32>, vector<32x32xf32>, vector<8x32xf32> -> vector<8x32xf32>
    %c0_107 = arith.constant 0 : index
    %c0_108 = arith.constant 0 : index
    %228 = vector.load %arg18[%c0_107, %c0_108] : memref<32x32xf32, #tpu.memory_space<vmem>>, vector<32x32xf32>
    %cst_109 = arith.constant dense<0.000000e+00> : vector<8x32xf32>
    %229 = tpu.matmul %225, %228, %cst_109 {dimension_numbers = #tpu.dot_dimension_numbers<[1], [0], [0], [1], [0, 0, 1, 1], [], []>} : vector<8x32xf32>, vector<32x32xf32>, vector<8x32xf32> -> vector<8x32xf32>
    %230 = arith.addf %227, %229 : vector<8x32xf32>
    %c0_110 = arith.constant 0 : index
    %c0_111 = arith.constant 0 : index
    %231 = vector.load %arg19[%c0_110, %c0_111] : memref<1x32xf32, #tpu.memory_space<vmem>>, vector<1x32xf32>
    %232 = vector.broadcast %231 : vector<1x32xf32> to vector<8x32xf32>
    %233 = arith.addf %230, %232 : vector<8x32xf32>
    %cst_112 = arith.constant 0.000000e+00 : f32
    %234 = vector.broadcast %cst_112 : f32 to vector<8x32xf32>
    %235 = arith.maximumf %233, %234 : vector<8x32xf32>
    %c0_113 = arith.constant 0 : index
    %c0_114 = arith.constant 0 : index
    %236 = vector.load %arg4[%c0_113, %c0_114] : memref<8x1xf32, #tpu.memory_space<vmem>>, vector<8x1xf32>
    %237 = vector.broadcast %236 : vector<8x1xf32> to vector<8x32xf32>
    %238 = arith.mulf %235, %237 : vector<8x32xf32>
    %c0_115 = arith.constant 0 : index
    %c0_116 = arith.constant 0 : index
    %239 = vector.load %arg20[%c0_115, %c0_116] : memref<8x32xf32, #tpu.memory_space<vmem>>, vector<8x32xf32>
    tpu.vector_store %arg20[%c0_115, %c0_116], %238 {strides = array<i32>} : memref<8x32xf32, #tpu.memory_space<vmem>>, vector<8x32xf32>,
    return
  }
}

</mosaic_0001>

<llo_original>
// kernel: encoder_forward.1
$region0: #{encoder_forward.1}
  #allocation0 [shape = 'u32[]', space=smem, size = 0x4, offset = 0x4, fixed_abs, tag = 'smem constant byte address 0x4 - core index']
  #allocation1 [shape = 'u32[72,128]{1,0:T(1,128)}', space=vmem, size = 0x9000, scoped, tag = 'internal scratch']
  %s0 = inlined_call_operand.vmem [shape: f32[64,8], index: 0, kind: input, shape index: {}]
  %s1 = inlined_call_operand.vmem [shape: f32[32,8], index: 1, kind: input, shape index: {}]
  %s2 = inlined_call_operand.vmem [shape: f32[64,8], index: 2, kind: input, shape index: {}]
  %s3 = inlined_call_operand.vmem [shape: f32[32,8], index: 3, kind: input, shape index: {}]
  %s4 = inlined_call_operand.vmem [shape: f32[8,1], index: 4, kind: input, shape index: {}]
  %s5 = inlined_call_operand.vmem [shape: f32[8,32], index: 5, kind: input, shape index: {}]
  %s6 = inlined_call_operand.vmem [shape: f32[1,32], index: 6, kind: input, shape index: {}]
  %s7 = inlined_call_operand.vmem [shape: f32[32,64], index: 7, kind: input, shape index: {}]
  %s8 = inlined_call_operand.vmem [shape: f32[32,32], index: 8, kind: input, shape index: {}]
  %s9 = inlined_call_operand.vmem [shape: f32[8,32], index: 9, kind: input, shape index: {}]
  %s10 = inlined_call_operand.vmem [shape: f32[1,32], index: 10, kind: input, shape index: {}]
  %s11 = inlined_call_operand.vmem [shape: f32[32,32], index: 11, kind: input, shape index: {}]
  %s12 = inlined_call_operand.vmem [shape: f32[1,32], index: 12, kind: input, shape index: {}]
  %s13 = inlined_call_operand.vmem [shape: f32[32,32], index: 13, kind: input, shape index: {}]
  %s14 = inlined_call_operand.vmem [shape: f32[1,32], index: 14, kind: input, shape index: {}]
  %s15 = inlined_call_operand.vmem [shape: f32[32,32], index: 15, kind: input, shape index: {}]
  %s16 = inlined_call_operand.vmem [shape: f32[1,32], index: 16, kind: input, shape index: {}]
  %s17 = inlined_call_operand.vmem [shape: f32[32,32], index: 17, kind: input, shape index: {}]
  %s18 = inlined_call_operand.vmem [shape: f32[32,32], index: 18, kind: input, shape index: {}]
  %s19 = inlined_call_operand.vmem [shape: f32[1,32], index: 19, kind: input, shape index: {}]
  %s20 = inlined_call_operand.hbm [shape: f32[8,32], index: 20, kind: output, shape index: {}]
  %s21 = sld [smem:[#allocation0]]
  $region90: #{encoder_forward.1} parent=0
    _
  %s23 = ssub.s32 1, %s21
  %s24 = scalar_select 0, %s23, %s21
  $region1: #{encoder_forward.1} parent=0
    #allocation2 [shape = 'u8[4096]{0}', space=vmem, size = 0x1000, scoped, tag = 'output window, operand 0, single buffered']
    #allocation3 [shape = 's32[1]{0}', space=sflag, size = 0x4, scoped, tag = 'scoped memory for encoder_forward.1']
    %25 = vsyncpa [#allocation3], 0
    // Predicated region
    $region2: #{encoder_forward.1} parent=1 // pred_check
      _
    $region3: #{encoder_forward.1} parent=1 // pred_check_branch
      %27 = sbr.rel (0) target = $region5
    $region4: #{encoder_forward.1} parent=1 // pred_region
      _
    $region5: #{encoder_forward.1} parent=1 // pred_fallthru
      _
    // Predicated region
    $region6: #{encoder_forward.1} parent=1 // pred_check
      _
    $region7: #{encoder_forward.1} parent=1 // pred_check_branch
      %29 = sbr.rel (0) target = $region9
    $region8: #{encoder_forward.1} parent=1 // pred_region
      _
    $region9: #{encoder_forward.1} parent=1 // pred_fallthru
      _
    // Predicated region
    $region10: #{encoder_forward.1} parent=1 // pred_check
      _
    $region11: #{encoder_forward.1} parent=1 // pred_check_branch
      %31 = sbr.rel (0) target = $region13
    $region12: #{encoder_forward.1} parent=1 // pred_region
      _
    $region13: #{encoder_forward.1} parent=1 // pred_fallthru
      _
    // Predicated region
    $region14: #{encoder_forward.1} parent=1 // pred_check
      _
    $region15: #{encoder_forward.1} parent=1 // pred_check_branch
      %33 = sbr.rel (0) target = $region17
    $region16: #{encoder_forward.1} parent=1 // pred_region
      _
    $region17: #{encoder_forward.1} parent=1 // pred_fallthru
      _
    // Predicated region
    $region18: #{encoder_forward.1} parent=1 // pred_check
      _
    $region19: #{encoder_forward.1} parent=1 // pred_check_branch
      %35 = sbr.rel (0) target = $region21
    $region20: #{encoder_forward.1} parent=1 // pred_region
      _
    $region21: #{encoder_forward.1} parent=1 // pred_fallthru
      _
    // Predicated region
    $region22: #{encoder_forward.1} parent=1 // pred_check
      _
    $region23: #{encoder_forward.1} parent=1 // pred_check_branch
      %37 = sbr.rel (0) target = $region25
    $region24: #{encoder_forward.1} parent=1 // pred_region
      _
    $region25: #{encoder_forward.1} parent=1 // pred_fallthru
      _
    // Predicated region
    $region26: #{encoder_forward.1} parent=1 // pred_check
      _
    $region27: #{encoder_forward.1} parent=1 // pred_check_branch
      %39 = sbr.rel (0) target = $region29
    $region28: #{encoder_forward.1} parent=1 // pred_region
      _
    $region29: #{encoder_forward.1} parent=1 // pred_fallthru
      _
    // Predicated region
    $region30: #{encoder_forward.1} parent=1 // pred_check
      _
    $region31: #{encoder_forward.1} parent=1 // pred_check_branch
      %41 = sbr.rel (0) target = $region33
    $region32: #{encoder_forward.1} parent=1 // pred_region
      _
    $region33: #{encoder_forward.1} parent=1 // pred_fallthru
      _
    // Predicated region
    $region34: #{encoder_forward.1} parent=1 // pred_check
      _
    $region35: #{encoder_forward.1} parent=1 // pred_check_branch
      %43 = sbr.rel (0) target = $region37
    $region36: #{encoder_forward.1} parent=1 // pred_region
      _
    $region37: #{encoder_forward.1} parent=1 // pred_fallthru
      _
    // Predicated region
    $region38: #{encoder_forward.1} parent=1 // pred_check
      _
    $region39: #{encoder_forward.1} parent=1 // pred_check_branch
      %45 = sbr.rel (0) target = $region41
    $region40: #{encoder_forward.1} parent=1 // pred_region
      _
    $region41: #{encoder_forward.1} parent=1 // pred_fallthru
      _
    // Predicated region
    $region42: #{encoder_forward.1} parent=1 // pred_check
      _
    $region43: #{encoder_forward.1} parent=1 // pred_check_branch
      %47 = sbr.rel (0) target = $region45
    $region44: #{encoder_forward.1} parent=1 // pred_region
      _
    $region45: #{encoder_forward.1} parent=1 // pred_fallthru
      _
    // Predicated region
    $region46: #{encoder_forward.1} parent=1 // pred_check
      _
    $region47: #{encoder_forward.1} parent=1 // pred_check_branch
      %49 = sbr.rel (0) target = $region49
    $region48: #{encoder_forward.1} parent=1 // pred_region
      _
    $region49: #{encoder_forward.1} parent=1 // pred_fallthru
      _
    // Predicated region
    $region50: #{encoder_forward.1} parent=1 // pred_check
      _
    $region51: #{encoder_forward.1} parent=1 // pred_check_branch
      %51 = sbr.rel (0) target = $region53
    $region52: #{encoder_forward.1} parent=1 // pred_region
      _
    $region53: #{encoder_forward.1} parent=1 // pred_fallthru
      _
    // Predicated region
    $region54: #{encoder_forward.1} parent=1 // pred_check
      _
    $region55: #{encoder_forward.1} parent=1 // pred_check_branch
      %53 = sbr.rel (0) target = $region57
    $region56: #{encoder_forward.1} parent=1 // pred_region
      _
    $region57: #{encoder_forward.1} parent=1 // pred_fallthru
      _
    // Predicated region
    $region58: #{encoder_forward.1} parent=1 // pred_check
      _
    $region59: #{encoder_forward.1} parent=1 // pred_check_branch
      %55 = sbr.rel (0) target = $region61
    $region60: #{encoder_forward.1} parent=1 // pred_region
      _
    $region61: #{encoder_forward.1} parent=1 // pred_fallthru
      _
    // Predicated region
    $region62: #{encoder_forward.1} parent=1 // pred_check
      _
    $region63: #{encoder_forward.1} parent=1 // pred_check_branch
      %57 = sbr.rel (0) target = $region65
    $region64: #{encoder_forward.1} parent=1 // pred_region
      _
    $region65: #{encoder_forward.1} parent=1 // pred_fallthru
      _
    // Predicated region
    $region66: #{encoder_forward.1} parent=1 // pred_check
      _
    $region67: #{encoder_forward.1} parent=1 // pred_check_branch
      %59 = sbr.rel (0) target = $region69
    $region68: #{encoder_forward.1} parent=1 // pred_region
      _
    $region69: #{encoder_forward.1} parent=1 // pred_fallthru
      _
    // Predicated region
    $region70: #{encoder_forward.1} parent=1 // pred_check
      _
    $region71: #{encoder_forward.1} parent=1 // pred_check_branch
      %61 = sbr.rel (0) target = $region73
    $region72: #{encoder_forward.1} parent=1 // pred_region
      _
    $region73: #{encoder_forward.1} parent=1 // pred_fallthru
      _
    // Predicated region
    $region74: #{encoder_forward.1} parent=1 // pred_check
      _
    $region75: #{encoder_forward.1} parent=1 // pred_check_branch
      %63 = sbr.rel (0) target = $region77
    $region76: #{encoder_forward.1} parent=1 // pred_region
      _
    $region77: #{encoder_forward.1} parent=1 // pred_fallthru
      _
    // Predicated region
    $region78: #{encoder_forward.1} parent=1 // pred_check
      _
    $region79: #{encoder_forward.1} parent=1 // pred_check_branch
      %65 = sbr.rel (0) target = $region81
    $region80: #{encoder_forward.1} parent=1 // pred_region
      _
    $region81: #{encoder_forward.1} parent=1 // pred_fallthru
      _
    %v66 = vld [vmem:[%s3] sm:$0xff]
    %v67 = vld [vmem:[%s3 + $0x8] sm:$0xff]
    %v68 = vld [vmem:[%s3 + $0x10] sm:$0xff]
    %v69 = vld [vmem:[%s3 + $0x18] sm:$0xff]
    %v70 = vld [vmem:[%s0] sm:$0xff]
    %v71 = vld [vmem:[%s0 + $0x8] sm:$0xff]
    %v72 = vld [vmem:[%s0 + $0x10] sm:$0xff]
    %v73 = vld [vmem:[%s0 + $0x18] sm:$0xff]
    %v74 = vld [vmem:[%s0 + $0x20] sm:$0xff]
    %v75 = vld [vmem:[%s0 + $0x28] sm:$0xff]
    %v76 = vld [vmem:[%s0 + $0x30] sm:$0xff]
    %v77 = vld [vmem:[%s0 + $0x38] sm:$0xff]
    %v78 = vld [vmem:[%s5] sm:$0xff]
    %v79 = vld [vmem:[%s6] sm:$0x1]
    %v81 = vperm.slane %v79, 0
    %vm83 = vcmask 64512
    %v85 = vsel %vm83, %v70, 0
    %v88 = vsel %vm83, %v71, 0
    %v91 = vsel %vm83, %v72, 0
    %v94 = vsel %vm83, %v73, 0
    %v97 = vsel %vm83, %v74, 0
    %v100 = vsel %vm83, %v75, 0
    %v103 = vsel %vm83, %v76, 0
    %v106 = vsel %vm83, %v77, 0
    %108 = vmatpush.msra.mxu0 0.0
    %109 = vmatpush.msra.mxu0 0.0
    %110 = vmatpush.msra.mxu0 0.0
    %111 = vmatpush.msra.mxu0 0.0
    %112 = vmatpush.msra.mxu0 0.0
    %113 = vmatpush.msra.mxu0 0.0
    %114 = vmatpush.msra.mxu0 0.0
    %115 = vmatpush.msra.mxu0 0.0
    %116 = vmatpush.msra.mxu0 0.0
    %117 = vmatpush.msra.mxu0 0.0
    %118 = vmatpush.msra.mxu0 0.0
    %119 = vmatpush.msra.mxu0 0.0
    %120 = vmatpush.msra.mxu0 0.0
    %121 = vmatpush.msra.mxu0 0.0
    %122 = vmatpush.msra.mxu0 0.0
    %123 = vmatpush.msra.mxu0 %v78
    %124 = vmatmul.f32.gmra.mxu0 %v85
    %v125 = vpop.f32.mrf.mxu0
    %v126 = vadd.f32 %v81, %v125
    %127 = vmatmul.f32.gmra.mxu0 %v88
    %v128 = vpop.f32.mrf.mxu0
    %v129 = vadd.f32 %v81, %v128
    %130 = vmatmul.f32.gmra.mxu0 %v91
    %v131 = vpop.f32.mrf.mxu0
    %v132 = vadd.f32 %v81, %v131
    %133 = vmatmul.f32.gmra.mxu0 %v94
    %v134 = vpop.f32.mrf.mxu0
    %v135 = vadd.f32 %v81, %v134
    %136 = vmatmul.f32.gmra.mxu0 %v97
    %v137 = vpop.f32.mrf.mxu0
    %v138 = vadd.f32 %v81, %v137
    %139 = vmatmul.f32.gmra.mxu0 %v100
    %v140 = vpop.f32.mrf.mxu0
    %v141 = vadd.f32 %v81, %v140
    %142 = vmatmul.f32.gmra.mxu0 %v103
    %v143 = vpop.f32.mrf.mxu0
    %v144 = vadd.f32 %v81, %v143
    %145 = vmatmul.f32.gmra.mxu0 %v106
    %v146 = vpop.f32.mrf.mxu0
    %v147 = vadd.f32 %v81, %v146
    %148 = vdwg.mxu0
    %v149 = vmax.f32 %v126, 0.0
    %v150 = vmax.f32 %v129, 0.0
    %v151 = vmax.f32 %v132, 0.0
    %v152 = vmax.f32 %v135, 0.0
    %v153 = vmax.f32 %v138, 0.0
    %v154 = vmax.f32 %v141, 0.0
    %v155 = vmax.f32 %v144, 0.0
    %v156 = vmax.f32 %v147, 0.0
    %v157 = vld [vmem:[%s1] sm:$0xff]
    %v158 = vld [vmem:[%s1 + $0x8] sm:$0xff]
    %v159 = vld [vmem:[%s1 + $0x10] sm:$0xff]
    %v160 = vld [vmem:[%s1 + $0x18] sm:$0xff]
    %v162 = vsel %vm83, %v157, 0
    %v165 = vsel %vm83, %v158, 0
    %v168 = vsel %vm83, %v159, 0
    %v171 = vsel %vm83, %v160, 0
    %173 = vmatpush.msra.mxu0 0.0
    %174 = vmatpush.msra.mxu0 0.0
    %175 = vmatpush.msra.mxu0 0.0
    %176 = vmatpush.msra.mxu0 0.0
    %177 = vmatpush.msra.mxu0 0.0
    %178 = vmatpush.msra.mxu0 0.0
    %179 = vmatpush.msra.mxu0 0.0
    %180 = vmatpush.msra.mxu0 0.0
    %181 = vmatpush.msra.mxu0 0.0
    %182 = vmatpush.msra.mxu0 0.0
    %183 = vmatpush.msra.mxu0 0.0
    %184 = vmatpush.msra.mxu0 0.0
    %185 = vmatpush.msra.mxu0 0.0
    %186 = vmatpush.msra.mxu0 0.0
    %187 = vmatpush.msra.mxu0 0.0
    %188 = vmatpush.msra.mxu0 %v78
    %189 = vmatmul.f32.gmra.mxu0 %v162
    %v190 = vpop.f32.mrf.mxu0
    %v191 = vadd.f32 %v81, %v190
    %192 = vmatmul.f32.gmra.mxu0 %v165
    %v193 = vpop.f32.mrf.mxu0
    %v194 = vadd.f32 %v81, %v193
    %195 = vmatmul.f32.gmra.mxu0 %v168
    %v196 = vpop.f32.mrf.mxu0
    %v197 = vadd.f32 %v81, %v196
    %198 = vmatmul.f32.gmra.mxu0 %v171
    %v199 = vpop.f32.mrf.mxu0
    %v200 = vadd.f32 %v81, %v199
    %201 = vdwg.mxu0
    %v202 = vmax.f32 %v191, 0.0
    %v203 = vmax.f32 %v194, 0.0
    %v204 = vmax.f32 %v197, 0.0
    %v205 = vmax.f32 %v200, 0.0
    %v206 = vld [vmem:[%s7] sm:$0xff]
    %v207 = vld [vmem:[%s7 + $0x8] sm:$0xff]
    %v208 = vld [vmem:[%s7 + $0x10] sm:$0xff]
    %v209 = vld [vmem:[%s7 + $0x18] sm:$0xff]
    %vm210 = vcmask 261120
    %v212 = vsel %vm210, %v149, 0
    %v215 = vsel %vm210, %v150, 0
    %v218 = vsel %vm210, %v151, 0
    %v221 = vsel %vm210, %v152, 0
    %v224 = vsel %vm210, %v153, 0
    %v227 = vsel %vm210, %v154, 0
    %v230 = vsel %vm210, %v155, 0
    %v233 = vsel %vm210, %v156, 0
    %235 = vmatpush.msra.mxu0 0.0
    %236 = vmatpush.msra.mxu0 0.0
    %237 = vmatpush.msra.mxu0 0.0
    %238 = vmatpush.msra.mxu0 0.0
    %239 = vmatpush.msra.mxu0 0.0
    %240 = vmatpush.msra.mxu0 0.0
    %241 = vmatpush.msra.mxu0 0.0
    %242 = vmatpush.msra.mxu0 0.0
    %243 = vmatpush.msra.mxu0 0.0
    %244 = vmatpush.msra.mxu0 0.0
    %245 = vmatpush.msra.mxu0 0.0
    %246 = vmatpush.msra.mxu0 0.0
    %247 = vmatpush.msra.mxu0 %v209
    %248 = vmatpush.msra.mxu0 %v208
    %249 = vmatpush.msra.mxu0 %v207
    %250 = vmatpush.msra.mxu0 %v206
    %251 = vmatmul.f32.gmra.mxu0 %v212
    %v252 = vpop.f32.mrf.mxu0
    %v253 = vadd.f32 0.0, %v252
    %254 = vmatmul.f32.gmra.mxu0 %v215
    %v255 = vpop.f32.mrf.mxu0
    %v256 = vadd.f32 0.0, %v255
    %257 = vmatmul.f32.gmra.mxu0 %v218
    %v258 = vpop.f32.mrf.mxu0
    %v259 = vadd.f32 0.0, %v258
    %260 = vmatmul.f32.gmra.mxu0 %v221
    %v261 = vpop.f32.mrf.mxu0
    %v262 = vadd.f32 0.0, %v261
    %263 = vmatmul.f32.gmra.mxu0 %v224
    %v264 = vpop.f32.mrf.mxu0
    %v265 = vadd.f32 0.0, %v264
    %266 = vmatmul.f32.gmra.mxu0 %v227
    %v267 = vpop.f32.mrf.mxu0
    %v268 = vadd.f32 0.0, %v267
    %269 = vmatmul.f32.gmra.mxu0 %v230
    %v270 = vpop.f32.mrf.mxu0
    %v271 = vadd.f32 0.0, %v270
    %272 = vmatmul.f32.gmra.mxu0 %v233
    %v273 = vpop.f32.mrf.mxu0
    %v274 = vadd.f32 0.0, %v273
    %275 = vdwg.mxu0
    %v276 = vld [vmem:[%s8] sm:$0xff]
    %v277 = vld [vmem:[%s8 + $0x8] sm:$0xff]
    %v278 = vld [vmem:[%s8 + $0x10] sm:$0xff]
    %v279 = vld [vmem:[%s8 + $0x18] sm:$0xff]
    %v281 = vsel %vm210, %v202, 0
    %v284 = vsel %vm210, %v203, 0
    %v287 = vsel %vm210, %v204, 0
    %v290 = vsel %vm210, %v205, 0
    %292 = vmatpush.msra.mxu0 0.0
    %293 = vmatpush.msra.mxu0 0.0
    %294 = vmatpush.msra.mxu0 0.0
    %295 = vmatpush.msra.mxu0 0.0
    %296 = vmatpush.msra.mxu0 0.0
    %297 = vmatpush.msra.mxu0 0.0
    %298 = vmatpush.msra.mxu0 0.0
    %299 = vmatpush.msra.mxu0 0.0
    %300 = vmatpush.msra.mxu0 0.0
    %301 = vmatpush.msra.mxu0 0.0
    %302 = vmatpush.msra.mxu0 0.0
    %303 = vmatpush.msra.mxu0 0.0
    %304 = vmatpush.msra.mxu0 %v279
    %305 = vmatpush.msra.mxu0 %v278
    %306 = vmatpush.msra.mxu0 %v277
    %307 = vmatpush.msra.mxu0 %v276
    %308 = vmatmul.f32.gmra.mxu0 %v281
    %v309 = vpop.f32.mrf.mxu0
    %v310 = vadd.f32 0.0, %v309
    %311 = vmatmul.f32.gmra.mxu0 %v284
    %v312 = vpop.f32.mrf.mxu0
    %v313 = vadd.f32 0.0, %v312
    %314 = vmatmul.f32.gmra.mxu0 %v287
    %v315 = vpop.f32.mrf.mxu0
    %v316 = vadd.f32 0.0, %v315
    %317 = vmatmul.f32.gmra.mxu0 %v290
    %v318 = vpop.f32.mrf.mxu0
    %v319 = vadd.f32 0.0, %v318
    %320 = vdwg.mxu0
    %v321 = vld [vmem:[%s2] sm:$0xff]
    %v322 = vld [vmem:[%s2 + $0x8] sm:$0xff]
    %v323 = vld [vmem:[%s2 + $0x10] sm:$0xff]
    %v324 = vld [vmem:[%s2 + $0x18] sm:$0xff]
    %v325 = vld [vmem:[%s2 + $0x20] sm:$0xff]
    %v326 = vld [vmem:[%s2 + $0x28] sm:$0xff]
    %v327 = vld [vmem:[%s2 + $0x30] sm:$0xff]
    %v328 = vld [vmem:[%s2 + $0x38] sm:$0xff]
    %v329 = vld [vmem:[%s9] sm:$0xff]
    %v330 = vld [vmem:[%s10] sm:$0x1]
    %v332 = vperm.slane %v330, 0
    %v335 = vsel %vm83, %v321, 0
    %v338 = vsel %vm83, %v322, 0
    %v341 = vsel %vm83, %v323, 0
    %v344 = vsel %vm83, %v324, 0
    %v347 = vsel %vm83, %v325, 0
    %v350 = vsel %vm83, %v326, 0
    %v353 = vsel %vm83, %v327, 0
    %v356 = vsel %vm83, %v328, 0
    %358 = vmatpush.msra.mxu0 0.0
    %359 = vmatpush.msra.mxu0 0.0
    %360 = vmatpush.msra.mxu0 0.0
    %361 = vmatpush.msra.mxu0 0.0
    %362 = vmatpush.msra.mxu0 0.0
    %363 = vmatpush.msra.mxu0 0.0
    %364 = vmatpush.msra.mxu0 0.0
    %365 = vmatpush.msra.mxu0 0.0
    %366 = vmatpush.msra.mxu0 0.0
    %367 = vmatpush.msra.mxu0 0.0
    %368 = vmatpush.msra.mxu0 0.0
    %369 = vmatpush.msra.mxu0 0.0
    %370 = vmatpush.msra.mxu0 0.0
    %371 = vmatpush.msra.mxu0 0.0
    %372 = vmatpush.msra.mxu0 0.0
    %373 = vmatpush.msra.mxu0 %v329
    %374 = vmatmul.f32.gmra.mxu0 %v335
    %v375 = vpop.f32.mrf.mxu0
    %v376 = vadd.f32 %v332, %v375
    %377 = vmatmul.f32.gmra.mxu0 %v338
    %v378 = vpop.f32.mrf.mxu0
    %v379 = vadd.f32 %v332, %v378
    %380 = vmatmul.f32.gmra.mxu0 %v341
    %v381 = vpop.f32.mrf.mxu0
    %v382 = vadd.f32 %v332, %v381
    %383 = vmatmul.f32.gmra.mxu0 %v344
    %v384 = vpop.f32.mrf.mxu0
    %v385 = vadd.f32 %v332, %v384
    %386 = vmatmul.f32.gmra.mxu0 %v347
    %v387 = vpop.f32.mrf.mxu0
    %v388 = vadd.f32 %v332, %v387
    %389 = vmatmul.f32.gmra.mxu0 %v350
    %v390 = vpop.f32.mrf.mxu0
    %v391 = vadd.f32 %v332, %v390
    %392 = vmatmul.f32.gmra.mxu0 %v353
    %v393 = vpop.f32.mrf.mxu0
    %v394 = vadd.f32 %v332, %v393
    %395 = vmatmul.f32.gmra.mxu0 %v356
    %v396 = vpop.f32.mrf.mxu0
    %v397 = vadd.f32 %v332, %v396
    %398 = vdwg.mxu0
    %v399 = vmax.f32 %v376, 0.0
    %v400 = vmax.f32 %v379, 0.0
    %v401 = vmax.f32 %v382, 0.0
    %v402 = vmax.f32 %v385, 0.0
    %v403 = vmax.f32 %v388, 0.0
    %v404 = vmax.f32 %v391, 0.0
    %v405 = vmax.f32 %v394, 0.0
    %v406 = vmax.f32 %v397, 0.0
    %v407 = vld [vmem:[%s11] sm:$0xff]
    %v408 = vld [vmem:[%s11 + $0x8] sm:$0xff]
    %v409 = vld [vmem:[%s11 + $0x10] sm:$0xff]
    %v410 = vld [vmem:[%s11 + $0x18] sm:$0xff]
    %v411 = vld [vmem:[%s12] sm:$0x1]
    %v413 = vperm.slane %v411, 0
    %v416 = vsel %vm210, %v399, 0
    %v419 = vsel %vm210, %v400, 0
    %v422 = vsel %vm210, %v401, 0
    %v425 = vsel %vm210, %v402, 0
    %v428 = vsel %vm210, %v403, 0
    %v431 = vsel %vm210, %v404, 0
    %v434 = vsel %vm210, %v405, 0
    %v437 = vsel %vm210, %v406, 0
    %439 = vmatpush.msra.mxu0 0.0
    %440 = vmatpush.msra.mxu0 0.0
    %441 = vmatpush.msra.mxu0 0.0
    %442 = vmatpush.msra.mxu0 0.0
    %443 = vmatpush.msra.mxu0 0.0
    %444 = vmatpush.msra.mxu0 0.0
    %445 = vmatpush.msra.mxu0 0.0
    %446 = vmatpush.msra.mxu0 0.0
    %447 = vmatpush.msra.mxu0 0.0
    %448 = vmatpush.msra.mxu0 0.0
    %449 = vmatpush.msra.mxu0 0.0
    %450 = vmatpush.msra.mxu0 0.0
    %451 = vmatpush.msra.mxu0 %v410
    %452 = vmatpush.msra.mxu0 %v409
    %453 = vmatpush.msra.mxu0 %v408
    %454 = vmatpush.msra.mxu0 %v407
    %455 = vmatmul.f32.gmra.mxu0 %v416
    %v456 = vpop.f32.mrf.mxu0
    %v457 = vadd.f32 %v413, %v456
    %458 = vmatmul.f32.gmra.mxu0 %v419
    %v459 = vpop.f32.mrf.mxu0
    %v460 = vadd.f32 %v413, %v459
    %461 = vmatmul.f32.gmra.mxu0 %v422
    %v462 = vpop.f32.mrf.mxu0
    %v463 = vadd.f32 %v413, %v462
    %464 = vmatmul.f32.gmra.mxu0 %v425
    %v465 = vpop.f32.mrf.mxu0
    %v466 = vadd.f32 %v413, %v465
    %467 = vmatmul.f32.gmra.mxu0 %v428
    %v468 = vpop.f32.mrf.mxu0
    %v469 = vadd.f32 %v413, %v468
    %470 = vmatmul.f32.gmra.mxu0 %v431
    %v471 = vpop.f32.mrf.mxu0
    %v472 = vadd.f32 %v413, %v471
    %473 = vmatmul.f32.gmra.mxu0 %v434
    %v474 = vpop.f32.mrf.mxu0
    %v475 = vadd.f32 %v413, %v474
    %476 = vmatmul.f32.gmra.mxu0 %v437
    %v477 = vpop.f32.mrf.mxu0
    %v478 = vadd.f32 %v413, %v477
    %479 = vdwg.mxu0
    %488 = vrot.lane.b32.xlu0 %v253, 96
    %v489 = vpop.permute.xlu0 %488
    %490 = vrot.lane.b32.xlu0 %v256, 96
    %v491 = vpop.permute.xlu0 %490
    %492 = vrot.lane.b32.xlu0 %v259, 96
    %v493 = vpop.permute.xlu0 %492
    %494 = vrot.lane.b32.xlu0 %v262, 96
    %v495 = vpop.permute.xlu0 %494
    %496 = vrot.lane.b32.xlu0 %v265, 96
    %v497 = vpop.permute.xlu0 %496
    %498 = vrot.lane.b32.xlu0 %v268, 96
    %v499 = vpop.permute.xlu0 %498
    %500 = vrot.lane.b32.xlu0 %v271, 96
    %v501 = vpop.permute.xlu0 %500
    %502 = vrot.lane.b32.xlu0 %v274, 96
    %v503 = vpop.permute.xlu0 %502
    %v512 = vsub.f32 %v310, %v489
    %v513 = vsub.f32 %v313, %v491
    %v514 = vsub.f32 %v316, %v493
    %v515 = vsub.f32 %v319, %v495
    %v516 = vsub.f32 %v310, %v497
    %v517 = vsub.f32 %v313, %v499
    %v518 = vsub.f32 %v316, %v501
    %v519 = vsub.f32 %v319, %v503
    %v520 = vadd.f32 %v512, %v457
    %v521 = vadd.f32 %v513, %v460
    %v522 = vadd.f32 %v514, %v463
    %v523 = vadd.f32 %v515, %v466
    %v524 = vadd.f32 %v516, %v469
    %v525 = vadd.f32 %v517, %v472
    %v526 = vadd.f32 %v518, %v475
    %v527 = vadd.f32 %v519, %v478
    %v528 = vld [vmem:[%s13] sm:$0xff]
    %v529 = vld [vmem:[%s13 + $0x8] sm:$0xff]
    %v530 = vld [vmem:[%s13 + $0x10] sm:$0xff]
    %v531 = vld [vmem:[%s13 + $0x18] sm:$0xff]
    %v532 = vld [vmem:[%s14] sm:$0x1]
    %v534 = vperm.slane %v532, 0
    %v537 = vsel %vm210, %v520, 0
    %v540 = vsel %vm210, %v521, 0
    %v543 = vsel %vm210, %v522, 0
    %v546 = vsel %vm210, %v523, 0
    %v549 = vsel %vm210, %v524, 0
    %v552 = vsel %vm210, %v525, 0
    %v555 = vsel %vm210, %v526, 0
    %v558 = vsel %vm210, %v527, 0
    %560 = vmatpush.msra.mxu0 0.0
    %561 = vmatpush.msra.mxu0 0.0
    %562 = vmatpush.msra.mxu0 0.0
    %563 = vmatpush.msra.mxu0 0.0
    %564 = vmatpush.msra.mxu0 0.0
    %565 = vmatpush.msra.mxu0 0.0
    %566 = vmatpush.msra.mxu0 0.0
    %567 = vmatpush.msra.mxu0 0.0
    %568 = vmatpush.msra.mxu0 0.0
    %569 = vmatpush.msra.mxu0 0.0
    %570 = vmatpush.msra.mxu0 0.0
    %571 = vmatpush.msra.mxu0 0.0
    %572 = vmatpush.msra.mxu0 %v531
    %573 = vmatpush.msra.mxu0 %v530
    %574 = vmatpush.msra.mxu0 %v529
    %575 = vmatpush.msra.mxu0 %v528
    %576 = vmatmul.f32.gmra.mxu0 %v537
    %v577 = vpop.f32.mrf.mxu0
    %v578 = vadd.f32 %v534, %v577
    %579 = vmatmul.f32.gmra.mxu0 %v540
    %v580 = vpop.f32.mrf.mxu0
    %v581 = vadd.f32 %v534, %v580
    %582 = vmatmul.f32.gmra.mxu0 %v543
    %v583 = vpop.f32.mrf.mxu0
    %v584 = vadd.f32 %v534, %v583
    %585 = vmatmul.f32.gmra.mxu0 %v546
    %v586 = vpop.f32.mrf.mxu0
    %v587 = vadd.f32 %v534, %v586
    %588 = vmatmul.f32.gmra.mxu0 %v549
    %v589 = vpop.f32.mrf.mxu0
    %v590 = vadd.f32 %v534, %v589
    %591 = vmatmul.f32.gmra.mxu0 %v552
    %v592 = vpop.f32.mrf.mxu0
    %v593 = vadd.f32 %v534, %v592
    %594 = vmatmul.f32.gmra.mxu0 %v555
    %v595 = vpop.f32.mrf.mxu0
    %v596 = vadd.f32 %v534, %v595
    %597 = vmatmul.f32.gmra.mxu0 %v558
    %v598 = vpop.f32.mrf.mxu0
    %v599 = vadd.f32 %v534, %v598
    %600 = vdwg.mxu0
    %v601 = vmax.f32 %v578, 0.0
    %v602 = vmax.f32 %v581, 0.0
    %v603 = vmax.f32 %v584, 0.0
    %v604 = vmax.f32 %v587, 0.0
    %v605 = vmax.f32 %v590, 0.0
    %v606 = vmax.f32 %v593, 0.0
    %v607 = vmax.f32 %v596, 0.0
    %v608 = vmax.f32 %v599, 0.0
    %v609 = vld [vmem:[%s15] sm:$0xff]
    %v610 = vld [vmem:[%s15 + $0x8] sm:$0xff]
    %v611 = vld [vmem:[%s15 + $0x10] sm:$0xff]
    %v612 = vld [vmem:[%s15 + $0x18] sm:$0xff]
    %v613 = vld [vmem:[%s16] sm:$0x1]
    %v615 = vperm.slane %v613, 0
    %v618 = vsel %vm210, %v601, 0
    %v621 = vsel %vm210, %v602, 0
    %v624 = vsel %vm210, %v603, 0
    %v627 = vsel %vm210, %v604, 0
    %v630 = vsel %vm210, %v605, 0
    %v633 = vsel %vm210, %v606, 0
    %v636 = vsel %vm210, %v607, 0
    %v639 = vsel %vm210, %v608, 0
    %641 = vmatpush.msra.mxu0 0.0
    %642 = vmatpush.msra.mxu0 0.0
    %643 = vmatpush.msra.mxu0 0.0
    %644 = vmatpush.msra.mxu0 0.0
    %645 = vmatpush.msra.mxu0 0.0
    %646 = vmatpush.msra.mxu0 0.0
    %647 = vmatpush.msra.mxu0 0.0
    %648 = vmatpush.msra.mxu0 0.0
    %649 = vmatpush.msra.mxu0 0.0
    %650 = vmatpush.msra.mxu0 0.0
    %651 = vmatpush.msra.mxu0 0.0
    %652 = vmatpush.msra.mxu0 0.0
    %653 = vmatpush.msra.mxu0 %v612
    %654 = vmatpush.msra.mxu0 %v611
    %655 = vmatpush.msra.mxu0 %v610
    %656 = vmatpush.msra.mxu0 %v609
    %657 = vmatmul.f32.gmra.mxu0 %v618
    %v658 = vpop.f32.mrf.mxu0
    %v659 = vadd.f32 %v615, %v658
    %660 = vmatmul.f32.gmra.mxu0 %v621
    %v661 = vpop.f32.mrf.mxu0
    %v662 = vadd.f32 %v615, %v661
    %663 = vmatmul.f32.gmra.mxu0 %v624
    %v664 = vpop.f32.mrf.mxu0
    %v665 = vadd.f32 %v615, %v664
    %666 = vmatmul.f32.gmra.mxu0 %v627
    %v667 = vpop.f32.mrf.mxu0
    %v668 = vadd.f32 %v615, %v667
    %669 = vmatmul.f32.gmra.mxu0 %v630
    %v670 = vpop.f32.mrf.mxu0
    %v671 = vadd.f32 %v615, %v670
    %672 = vmatmul.f32.gmra.mxu0 %v633
    %v673 = vpop.f32.mrf.mxu0
    %v674 = vadd.f32 %v615, %v673
    %675 = vmatmul.f32.gmra.mxu0 %v636
    %v676 = vpop.f32.mrf.mxu0
    %v677 = vadd.f32 %v615, %v676
    %678 = vmatmul.f32.gmra.mxu0 %v639
    %v679 = vpop.f32.mrf.mxu0
    %v680 = vadd.f32 %v615, %v679
    %681 = vdwg.mxu0
    %v682 = vadd.f32 %v253, %v457
    %v683 = vadd.f32 %v256, %v460
    %v684 = vadd.f32 %v259, %v463
    %v685 = vadd.f32 %v262, %v466
    %v686 = vadd.f32 %v265, %v469
    %v687 = vadd.f32 %v268, %v472
    %v688 = vadd.f32 %v271, %v475
    %v689 = vadd.f32 %v274, %v478
    %vm690 = vcmp.gt.f32.partialorder %v66, 0.5
    %vm691 = vcmp.gt.f32.partialorder %v67, 0.5
    %vm692 = vcmp.gt.f32.partialorder %v68, 0.5
    %vm693 = vcmp.gt.f32.partialorder %v69, 0.5
    %v694 = vsel %vm690, 1, 0
    %v695 = vsel %vm691, 1, 0
    %v696 = vsel %vm692, 1, 0
    %v697 = vsel %vm693, 1, 0
    %698 = vset.pattern.permute.xlu0 0
    %699 = vperm.xlu0 %698, %v694
    %v700 = vpop.permute.xlu0 %699
    %701 = vset.pattern.permute.xlu0 0
    %702 = vperm.xlu0 %701, %v695
    %v703 = vpop.permute.xlu0 %702
    %704 = vset.pattern.permute.xlu0 0
    %705 = vperm.xlu0 %704, %v696
    %v706 = vpop.permute.xlu0 %705
    %707 = vset.pattern.permute.xlu0 0
    %708 = vperm.xlu0 %707, %v697
    %v709 = vpop.permute.xlu0 %708
    %vm710 = vcmp.eq.s32.totalorder %v700, 1
    %vm711 = vcmp.eq.s32.totalorder %v703, 1
    %vm712 = vcmp.eq.s32.totalorder %v706, 1
    %vm713 = vcmp.eq.s32.totalorder %v709, 1
    %v714 = vsel %vm710, %v659, -1e+30
    %v715 = vsel %vm711, %v662, -1e+30
    %v716 = vsel %vm712, %v665, -1e+30
    %v717 = vsel %vm713, %v668, -1e+30
    %v718 = vsel %vm210, %v714, -inf
    %v719 = vsel %vm210, %v715, -inf
    %v720 = vsel %vm210, %v716, -inf
    %v721 = vsel %vm210, %v717, -inf
    %v722 = vmax.f32 %v718, %v719
    %v723 = vmax.f32 %v720, %v721
    %v724 = vmax.f32 %v722, %v723
    %v725 = vrot.slane %v724, 4
    %v726 = vmax.f32 %v724, %v725
    %v727 = vrot.slane %v726, 2
    %v728 = vmax.f32 %v726, %v727
    %v729 = vrot.slane %v728, 1
    %v730 = vmax.f32 %v728, %v729
    %731 = vset.pattern.permute.xlu0 1
    %732 = vperm.xlu0 %731, %v694
    %v733 = vpop.permute.xlu0 %732
    %734 = vset.pattern.permute.xlu0 1
    %735 = vperm.xlu0 %734, %v695
    %v736 = vpop.permute.xlu0 %735
    %737 = vset.pattern.permute.xlu0 1
    %738 = vperm.xlu0 %737, %v696
    %v739 = vpop.permute.xlu0 %738
    %740 = vset.pattern.permute.xlu0 1
    %741 = vperm.xlu0 %740, %v697
    %v742 = vpop.permute.xlu0 %741
    %vm743 = vcmp.eq.s32.totalorder %v733, 1
    %vm744 = vcmp.eq.s32.totalorder %v736, 1
    %vm745 = vcmp.eq.s32.totalorder %v739, 1
    %vm746 = vcmp.eq.s32.totalorder %v742, 1
    %v747 = vsel %vm743, %v659, -1e+30
    %v748 = vsel %vm744, %v662, -1e+30
    %v749 = vsel %vm745, %v665, -1e+30
    %v750 = vsel %vm746, %v668, -1e+30
    %v751 = vsel %vm210, %v747, -inf
    %v752 = vsel %vm210, %v748, -inf
    %v753 = vsel %vm210, %v749, -inf
    %v754 = vsel %vm210, %v750, -inf
    %v755 = vmax.f32 %v751, %v752
    %v756 = vmax.f32 %v753, %v754
    %v757 = vmax.f32 %v755, %v756
    %v758 = vrot.slane %v757, 4
    %v759 = vmax.f32 %v757, %v758
    %v760 = vrot.slane %v759, 2
    %v761 = vmax.f32 %v759, %v760
    %v762 = vrot.slane %v761, 1
    %v763 = vmax.f32 %v761, %v762
    %764 = vset.pattern.permute.xlu0 2
    %765 = vperm.xlu0 %764, %v694
    %v766 = vpop.permute.xlu0 %765
    %767 = vset.pattern.permute.xlu0 2
    %768 = vperm.xlu0 %767, %v695
    %v769 = vpop.permute.xlu0 %768
    %770 = vset.pattern.permute.xlu0 2
    %771 = vperm.xlu0 %770, %v696
    %v772 = vpop.permute.xlu0 %771
    %773 = vset.pattern.permute.xlu0 2
    %774 = vperm.xlu0 %773, %v697
    %v775 = vpop.permute.xlu0 %774
    %vm776 = vcmp.eq.s32.totalorder %v766, 1
    %vm777 = vcmp.eq.s32.totalorder %v769, 1
    %vm778 = vcmp.eq.s32.totalorder %v772, 1
    %vm779 = vcmp.eq.s32.totalorder %v775, 1
    %v780 = vsel %vm776, %v659, -1e+30
    %v781 = vsel %vm777, %v662, -1e+30
    %v782 = vsel %vm778, %v665, -1e+30
    %v783 = vsel %vm779, %v668, -1e+30
    %v784 = vsel %vm210, %v780, -inf
    %v785 = vsel %vm210, %v781, -inf
    %v786 = vsel %vm210, %v782, -inf
    %v787 = vsel %vm210, %v783, -inf
    %v788 = vmax.f32 %v784, %v785
    %v789 = vmax.f32 %v786, %v787
    %v790 = vmax.f32 %v788, %v789
    %v791 = vrot.slane %v790, 4
    %v792 = vmax.f32 %v790, %v791
    %v793 = vrot.slane %v792, 2
    %v794 = vmax.f32 %v792, %v793
    %v795 = vrot.slane %v794, 1
    %v796 = vmax.f32 %v794, %v795
    %797 = vset.pattern.permute.xlu0 3
    %798 = vperm.xlu0 %797, %v694
    %v799 = vpop.permute.xlu0 %798
    %800 = vset.pattern.permute.xlu0 3
    %801 = vperm.xlu0 %800, %v695
    %v802 = vpop.permute.xlu0 %801
    %803 = vset.pattern.permute.xlu0 3
    %804 = vperm.xlu0 %803, %v696
    %v805 = vpop.permute.xlu0 %804
    %806 = vset.pattern.permute.xlu0 3
    %807 = vperm.xlu0 %806, %v697
    %v808 = vpop.permute.xlu0 %807
    %vm809 = vcmp.eq.s32.totalorder %v799, 1
    %vm810 = vcmp.eq.s32.totalorder %v802, 1
    %vm811 = vcmp.eq.s32.totalorder %v805, 1
    %vm812 = vcmp.eq.s32.totalorder %v808, 1
    %v813 = vsel %vm809, %v659, -1e+30
    %v814 = vsel %vm810, %v662, -1e+30
    %v815 = vsel %vm811, %v665, -1e+30
    %v816 = vsel %vm812, %v668, -1e+30
    %v817 = vsel %vm210, %v813, -inf
    %v818 = vsel %vm210, %v814, -inf
    %v819 = vsel %vm210, %v815, -inf
    %v820 = vsel %vm210, %v816, -inf
    %v821 = vmax.f32 %v817, %v818
    %v822 = vmax.f32 %v819, %v820
    %v823 = vmax.f32 %v821, %v822
    %v824 = vrot.slane %v823, 4
    %v825 = vmax.f32 %v823, %v824
    %v826 = vrot.slane %v825, 2
    %v827 = vmax.f32 %v825, %v826
    %v828 = vrot.slane %v827, 1
    %v829 = vmax.f32 %v827, %v828
    %830 = vset.pattern.permute.xlu0 4
    %831 = vperm.xlu0 %830, %v694
    %v832 = vpop.permute.xlu0 %831
    %833 = vset.pattern.permute.xlu0 4
    %834 = vperm.xlu0 %833, %v695
    %v835 = vpop.permute.xlu0 %834
    %836 = vset.pattern.permute.xlu0 4
    %837 = vperm.xlu0 %836, %v696
    %v838 = vpop.permute.xlu0 %837
    %839 = vset.pattern.permute.xlu0 4
    %840 = vperm.xlu0 %839, %v697
    %v841 = vpop.permute.xlu0 %840
    %vm842 = vcmp.eq.s32.totalorder %v832, 1
    %vm843 = vcmp.eq.s32.totalorder %v835, 1
    %vm844 = vcmp.eq.s32.totalorder %v838, 1
    %vm845 = vcmp.eq.s32.totalorder %v841, 1
    %v846 = vsel %vm842, %v659, -1e+30
    %v847 = vsel %vm843, %v662, -1e+30
    %v848 = vsel %vm844, %v665, -1e+30
    %v849 = vsel %vm845, %v668, -1e+30
    %v850 = vsel %vm210, %v846, -inf
    %v851 = vsel %vm210, %v847, -inf
    %v852 = vsel %vm210, %v848, -inf
    %v853 = vsel %vm210, %v849, -inf
    %v854 = vmax.f32 %v850, %v851
    %v855 = vmax.f32 %v852, %v853
    %v856 = vmax.f32 %v854, %v855
    %v857 = vrot.slane %v856, 4
    %v858 = vmax.f32 %v856, %v857
    %v859 = vrot.slane %v858, 2
    %v860 = vmax.f32 %v858, %v859
    %v861 = vrot.slane %v860, 1
    %v862 = vmax.f32 %v860, %v861
    %863 = vset.pattern.permute.xlu0 5
    %864 = vperm.xlu0 %863, %v694
    %v865 = vpop.permute.xlu0 %864
    %866 = vset.pattern.permute.xlu0 5
    %867 = vperm.xlu0 %866, %v695
    %v868 = vpop.permute.xlu0 %867
    %869 = vset.pattern.permute.xlu0 5
    %870 = vperm.xlu0 %869, %v696
    %v871 = vpop.permute.xlu0 %870
    %872 = vset.pattern.permute.xlu0 5
    %873 = vperm.xlu0 %872, %v697
    %v874 = vpop.permute.xlu0 %873
    %vm875 = vcmp.eq.s32.totalorder %v865, 1
    %vm876 = vcmp.eq.s32.totalorder %v868, 1
    %vm877 = vcmp.eq.s32.totalorder %v871, 1
    %vm878 = vcmp.eq.s32.totalorder %v874, 1
    %v879 = vsel %vm875, %v659, -1e+30
    %v880 = vsel %vm876, %v662, -1e+30
    %v881 = vsel %vm877, %v665, -1e+30
    %v882 = vsel %vm878, %v668, -1e+30
    %v883 = vsel %vm210, %v879, -inf
    %v884 = vsel %vm210, %v880, -inf
    %v885 = vsel %vm210, %v881, -inf
    %v886 = vsel %vm210, %v882, -inf
    %v887 = vmax.f32 %v883, %v884
    %v888 = vmax.f32 %v885, %v886
    %v889 = vmax.f32 %v887, %v888
    %v890 = vrot.slane %v889, 4
    %v891 = vmax.f32 %v889, %v890
    %v892 = vrot.slane %v891, 2
    %v893 = vmax.f32 %v891, %v892
    %v894 = vrot.slane %v893, 1
    %v895 = vmax.f32 %v893, %v894
    %896 = vset.pattern.permute.xlu0 6
    %897 = vperm.xlu0 %896, %v694
    %v898 = vpop.permute.xlu0 %897
    %899 = vset.pattern.permute.xlu0 6
    %900 = vperm.xlu0 %899, %v695
    %v901 = vpop.permute.xlu0 %900
    %902 = vset.pattern.permute.xlu0 6
    %903 = vperm.xlu0 %902, %v696
    %v904 = vpop.permute.xlu0 %903
    %905 = vset.pattern.permute.xlu0 6
    %906 = vperm.xlu0 %905, %v697
    %v907 = vpop.permute.xlu0 %906
    %vm908 = vcmp.eq.s32.totalorder %v898, 1
    %vm909 = vcmp.eq.s32.totalorder %v901, 1
    %vm910 = vcmp.eq.s32.totalorder %v904, 1
    %vm911 = vcmp.eq.s32.totalorder %v907, 1
    %v912 = vsel %vm908, %v659, -1e+30
    %v913 = vsel %vm909, %v662, -1e+30
    %v914 = vsel %vm910, %v665, -1e+30
    %v915 = vsel %vm911, %v668, -1e+30
    %v916 = vsel %vm210, %v912, -inf
    %v917 = vsel %vm210, %v913, -inf
    %v918 = vsel %vm210, %v914, -inf
    %v919 = vsel %vm210, %v915, -inf
    %v920 = vmax.f32 %v916, %v917
    %v921 = vmax.f32 %v918, %v919
    %v922 = vmax.f32 %v920, %v921
    %v923 = vrot.slane %v922, 4
    %v924 = vmax.f32 %v922, %v923
    %v925 = vrot.slane %v924, 2
    %v926 = vmax.f32 %v924, %v925
    %v927 = vrot.slane %v926, 1
    %v928 = vmax.f32 %v926, %v927
    %929 = vset.pattern.permute.xlu0 7
    %930 = vperm.xlu0 %929, %v694
    %v931 = vpop.permute.xlu0 %930
    %932 = vset.pattern.permute.xlu0 7
    %933 = vperm.xlu0 %932, %v695
    %v934 = vpop.permute.xlu0 %933
    %935 = vset.pattern.permute.xlu0 7
    %936 = vperm.xlu0 %935, %v696
    %v937 = vpop.permute.xlu0 %936
    %938 = vset.pattern.permute.xlu0 7
    %939 = vperm.xlu0 %938, %v697
    %v940 = vpop.permute.xlu0 %939
    %vm941 = vcmp.eq.s32.totalorder %v931, 1
    %vm942 = vcmp.eq.s32.totalorder %v934, 1
    %vm943 = vcmp.eq.s32.totalorder %v937, 1
    %vm944 = vcmp.eq.s32.totalorder %v940, 1
    %v945 = vsel %vm941, %v659, -1e+30
    %v946 = vsel %vm942, %v662, -1e+30
    %v947 = vsel %vm943, %v665, -1e+30
    %v948 = vsel %vm944, %v668, -1e+30
    %v949 = vsel %vm210, %v945, -inf
    %v950 = vsel %vm210, %v946, -inf
    %v951 = vsel %vm210, %v947, -inf
    %v952 = vsel %vm210, %v948, -inf
    %v953 = vmax.f32 %v949, %v950
    %v954 = vmax.f32 %v951, %v952
    %v955 = vmax.f32 %v953, %v954
    %v956 = vrot.slane %v955, 4
    %v957 = vmax.f32 %v955, %v956
    %v958 = vrot.slane %v957, 2
    %v959 = vmax.f32 %v957, %v958
    %v960 = vrot.slane %v959, 1
    %v961 = vmax.f32 %v959, %v960
    %vm962 = vcmask 1040384
    %v963 = vsel %vm962, %v730, %v763
    %vm964 = vcmask 1041408
    %v965 = vsel %vm964, %v963, %v796
    %vm966 = vcmask 1042432
    %v967 = vsel %vm966, %v965, %v829
    %vm968 = vcmask 1043456
    %v969 = vsel %vm968, %v967, %v862
    %vm970 = vcmask 1044480
    %v971 = vsel %vm970, %v969, %v895
    %vm972 = vcmask 1045504
    %v973 = vsel %vm972, %v971, %v928
    %vm974 = vcmask 1046528
    %v975 = vsel %vm974, %v973, %v961
    %v977 = vsel %vm83, %v66, 0
    %v980 = vsel %vm83, %v67, 0
    %v983 = vsel %vm83, %v68, 0
    %v986 = vsel %vm83, %v69, 0
    %988 = vmatpush.msra.mxu0 0.0
    %989 = vmatpush.msra.mxu0 0.0
    %990 = vmatpush.msra.mxu0 0.0
    %991 = vmatpush.msra.mxu0 0.0
    %992 = vmatpush.msra.mxu0 0.0
    %993 = vmatpush.msra.mxu0 0.0
    %994 = vmatpush.msra.mxu0 0.0
    %995 = vmatpush.msra.mxu0 0.0
    %996 = vmatpush.msra.mxu0 0.0
    %997 = vmatpush.msra.mxu0 0.0
    %998 = vmatpush.msra.mxu0 0.0
    %999 = vmatpush.msra.mxu0 0.0
    %1000 = vmatpush.msra.mxu0 0.0
    %1001 = vmatpush.msra.mxu0 0.0
    %1002 = vmatpush.msra.mxu0 0.0
    %1003 = vmatpush.msra.mxu0 %v975
    %1004 = vmatmul.f32.gmra.mxu0 %v977
    %v1005 = vpop.f32.mrf.mxu0
    %v1006 = vadd.f32 0.0, %v1005
    %1007 = vmatmul.f32.gmra.mxu0 %v980
    %v1008 = vpop.f32.mrf.mxu0
    %v1009 = vadd.f32 0.0, %v1008
    %1010 = vmatmul.f32.gmra.mxu0 %v983
    %v1011 = vpop.f32.mrf.mxu0
    %v1012 = vadd.f32 0.0, %v1011
    %1013 = vmatmul.f32.gmra.mxu0 %v986
    %v1014 = vpop.f32.mrf.mxu0
    %v1015 = vadd.f32 0.0, %v1014
    %1016 = vdwg.mxu0
    %v1017 = vsub.f32 %v659, %v1006
    %v1018 = vsub.f32 %v662, %v1009
    %v1019 = vsub.f32 %v665, %v1012
    %v1020 = vsub.f32 %v668, %v1015
    %v1021 = vmul.f32 %v1017, 1.442695
    %v1022 = vpow.pop %v1021
    %v1023 = vmul.f32 %v1018, 1.442695
    %v1024 = vpow.pop %v1023
    %v1025 = vmul.f32 %v1019, 1.442695
    %v1026 = vpow.pop %v1025
    %v1027 = vmul.f32 %v1020, 1.442695
    %v1028 = vpow.pop %v1027
    %1029 = vxpose.xlu0.b32.start [1/16] %v66, 128
    %1030 = vxpose.xlu0.b32.cont [2/16] %v67, 128
    %1031 = vxpose.xlu0.b32.cont [3/16] %v68, 128
    %1032 = vxpose.xlu0.b32.cont [4/16] %v69, 128
    %1033 = vxpose.xlu0.b32.cont [5/16] 0.0, 128
    %1034 = vxpose.xlu0.b32.cont [6/16] 0.0, 128
    %1035 = vxpose.xlu0.b32.cont [7/16] 0.0, 128
    %1036 = vxpose.xlu0.b32.cont [8/16] 0.0, 128
    %1037 = vxpose.xlu0.b32.cont [9/16] 0.0, 128
    %1038 = vxpose.xlu0.b32.cont [10/16] 0.0, 128
    %1039 = vxpose.xlu0.b32.cont [11/16] 0.0, 128
    %1040 = vxpose.xlu0.b32.cont [12/16] 0.0, 128
    %1041 = vxpose.xlu0.b32.cont [13/16] 0.0, 128
    %1042 = vxpose.xlu0.b32.cont [14/16] 0.0, 128
    %1043 = vxpose.xlu0.b32.cont [15/16] 0.0, 128
    %1044 = vxpose.xlu0.b32.end [16/16] 0.0, 128
    %v1045 = vpop.trf.xlu0
    %v1046 = vpop.trf.xlu0
    %v1047 = vpop.trf.xlu0
    %v1048 = vpop.trf.xlu0
    %v1049 = vpop.trf.xlu0
    %v1050 = vpop.trf.xlu0
    %v1051 = vpop.trf.xlu0
    %v1052 = vpop.trf.xlu0
    %v1053 = vpop.trf.xlu0
    %v1054 = vpop.trf.xlu0
    %v1055 = vpop.trf.xlu0
    %v1056 = vpop.trf.xlu0
    %v1057 = vpop.trf.xlu0
    %v1058 = vpop.trf.xlu0
    %v1059 = vpop.trf.xlu0
    %v1060 = vpop.trf.xlu0
    %v1062 = vsel %vm210, %v1045, 0
    %1064 = vmatpush.msra.mxu0 0.0
    %1065 = vmatpush.msra.mxu0 0.0
    %1066 = vmatpush.msra.mxu0 0.0
    %1067 = vmatpush.msra.mxu0 0.0
    %1068 = vmatpush.msra.mxu0 0.0
    %1069 = vmatpush.msra.mxu0 0.0
    %1070 = vmatpush.msra.mxu0 0.0
    %1071 = vmatpush.msra.mxu0 0.0
    %1072 = vmatpush.msra.mxu0 0.0
    %1073 = vmatpush.msra.mxu0 0.0
    %1074 = vmatpush.msra.mxu0 0.0
    %1075 = vmatpush.msra.mxu0 0.0
    %1076 = vmatpush.msra.mxu0 %v1028
    %1077 = vmatpush.msra.mxu0 %v1026
    %1078 = vmatpush.msra.mxu0 %v1024
    %1079 = vmatpush.msra.mxu0 %v1022
    %1080 = vmatmul.f32.gmra.mxu0 %v1062
    %v1081 = vpop.f32.mrf.mxu0
    %v1082 = vadd.f32 1e-16, %v1081
    %1083 = vdwg.mxu0
    %v1084 = vmul.f32 %v1022, %v682
    %v1085 = vmul.f32 %v1024, %v683
    %v1086 = vmul.f32 %v1026, %v684
    %v1087 = vmul.f32 %v1028, %v685
    %1088 = vmatpush.msra.mxu0 0.0
    %1089 = vmatpush.msra.mxu0 0.0
    %1090 = vmatpush.msra.mxu0 0.0
    %1091 = vmatpush.msra.mxu0 0.0
    %1092 = vmatpush.msra.mxu0 0.0
    %1093 = vmatpush.msra.mxu0 0.0
    %1094 = vmatpush.msra.mxu0 0.0
    %1095 = vmatpush.msra.mxu0 0.0
    %1096 = vmatpush.msra.mxu0 0.0
    %1097 = vmatpush.msra.mxu0 0.0
    %1098 = vmatpush.msra.mxu0 0.0
    %1099 = vmatpush.msra.mxu0 0.0
    %1100 = vmatpush.msra.mxu0 %v1087
    %1101 = vmatpush.msra.mxu0 %v1086
    %1102 = vmatpush.msra.mxu0 %v1085
    %1103 = vmatpush.msra.mxu0 %v1084
    %1104 = vmatmul.f32.gmra.mxu0 %v1062
    %v1105 = vpop.f32.mrf.mxu0
    %v1106 = vadd.f32 0.0, %v1105
    %1107 = vdwg.mxu0
    %v1108 = vrcp.pop %v1082
    %v1109 = vmul.f32 %v1106, %v1108
    %v1110 = vmax.f32 %v1109, 0.0
    %v1111 = vsel %vm710, %v671, -1e+30
    %v1112 = vsel %vm711, %v674, -1e+30
    %v1113 = vsel %vm712, %v677, -1e+30
    %v1114 = vsel %vm713, %v680, -1e+30
    %v1115 = vsel %vm210, %v1111, -inf
    %v1116 = vsel %vm210, %v1112, -inf
    %v1117 = vsel %vm210, %v1113, -inf
    %v1118 = vsel %vm210, %v1114, -inf
    %v1119 = vmax.f32 %v1115, %v1116
    %v1120 = vmax.f32 %v1117, %v1118
    %v1121 = vmax.f32 %v1119, %v1120
    %v1122 = vrot.slane %v1121, 4
    %v1123 = vmax.f32 %v1121, %v1122
    %v1124 = vrot.slane %v1123, 2
    %v1125 = vmax.f32 %v1123, %v1124
    %v1126 = vrot.slane %v1125, 1
    %v1127 = vmax.f32 %v1125, %v1126
    %v1128 = vsel %vm743, %v671, -1e+30
    %v1129 = vsel %vm744, %v674, -1e+30
    %v1130 = vsel %vm745, %v677, -1e+30
    %v1131 = vsel %vm746, %v680, -1e+30
    %v1132 = vsel %vm210, %v1128, -inf
    %v1133 = vsel %vm210, %v1129, -inf
    %v1134 = vsel %vm210, %v1130, -inf
    %v1135 = vsel %vm210, %v1131, -inf
    %v1136 = vmax.f32 %v1132, %v1133
    %v1137 = vmax.f32 %v1134, %v1135
    %v1138 = vmax.f32 %v1136, %v1137
    %v1139 = vrot.slane %v1138, 4
    %v1140 = vmax.f32 %v1138, %v1139
    %v1141 = vrot.slane %v1140, 2
    %v1142 = vmax.f32 %v1140, %v1141
    %v1143 = vrot.slane %v1142, 1
    %v1144 = vmax.f32 %v1142, %v1143
    %v1145 = vsel %vm776, %v671, -1e+30
    %v1146 = vsel %vm777, %v674, -1e+30
    %v1147 = vsel %vm778, %v677, -1e+30
    %v1148 = vsel %vm779, %v680, -1e+30
    %v1149 = vsel %vm210, %v1145, -inf
    %v1150 = vsel %vm210, %v1146, -inf
    %v1151 = vsel %vm210, %v1147, -inf
    %v1152 = vsel %vm210, %v1148, -inf
    %v1153 = vmax.f32 %v1149, %v1150
    %v1154 = vmax.f32 %v1151, %v1152
    %v1155 = vmax.f32 %v1153, %v1154
    %v1156 = vrot.slane %v1155, 4
    %v1157 = vmax.f32 %v1155, %v1156
    %v1158 = vrot.slane %v1157, 2
    %v1159 = vmax.f32 %v1157, %v1158
    %v1160 = vrot.slane %v1159, 1
    %v1161 = vmax.f32 %v1159, %v1160
    %v1162 = vsel %vm809, %v671, -1e+30
    %v1163 = vsel %vm810, %v674, -1e+30
    %v1164 = vsel %vm811, %v677, -1e+30
    %v1165 = vsel %vm812, %v680, -1e+30
    %v1166 = vsel %vm210, %v1162, -inf
    %v1167 = vsel %vm210, %v1163, -inf
    %v1168 = vsel %vm210, %v1164, -inf
    %v1169 = vsel %vm210, %v1165, -inf
    %v1170 = vmax.f32 %v1166, %v1167
    %v1171 = vmax.f32 %v1168, %v1169
    %v1172 = vmax.f32 %v1170, %v1171
    %v1173 = vrot.slane %v1172, 4
    %v1174 = vmax.f32 %v1172, %v1173
    %v1175 = vrot.slane %v1174, 2
    %v1176 = vmax.f32 %v1174, %v1175
    %v1177 = vrot.slane %v1176, 1
    %v1178 = vmax.f32 %v1176, %v1177
    %v1179 = vsel %vm842, %v671, -1e+30
    %v1180 = vsel %vm843, %v674, -1e+30
    %v1181 = vsel %vm844, %v677, -1e+30
    %v1182 = vsel %vm845, %v680, -1e+30
    %v1183 = vsel %vm210, %v1179, -inf
    %v1184 = vsel %vm210, %v1180, -inf
    %v1185 = vsel %vm210, %v1181, -inf
    %v1186 = vsel %vm210, %v1182, -inf
    %v1187 = vmax.f32 %v1183, %v1184
    %v1188 = vmax.f32 %v1185, %v1186
    %v1189 = vmax.f32 %v1187, %v1188
    %v1190 = vrot.slane %v1189, 4
    %v1191 = vmax.f32 %v1189, %v1190
    %v1192 = vrot.slane %v1191, 2
    %v1193 = vmax.f32 %v1191, %v1192
    %v1194 = vrot.slane %v1193, 1
    %v1195 = vmax.f32 %v1193, %v1194
    %v1196 = vsel %vm875, %v671, -1e+30
    %v1197 = vsel %vm876, %v674, -1e+30
    %v1198 = vsel %vm877, %v677, -1e+30
    %v1199 = vsel %vm878, %v680, -1e+30
    %v1200 = vsel %vm210, %v1196, -inf
    %v1201 = vsel %vm210, %v1197, -inf
    %v1202 = vsel %vm210, %v1198, -inf
    %v1203 = vsel %vm210, %v1199, -inf
    %v1204 = vmax.f32 %v1200, %v1201
    %v1205 = vmax.f32 %v1202, %v1203
    %v1206 = vmax.f32 %v1204, %v1205
    %v1207 = vrot.slane %v1206, 4
    %v1208 = vmax.f32 %v1206, %v1207
    %v1209 = vrot.slane %v1208, 2
    %v1210 = vmax.f32 %v1208, %v1209
    %v1211 = vrot.slane %v1210, 1
    %v1212 = vmax.f32 %v1210, %v1211
    %v1213 = vsel %vm908, %v671, -1e+30
    %v1214 = vsel %vm909, %v674, -1e+30
    %v1215 = vsel %vm910, %v677, -1e+30
    %v1216 = vsel %vm911, %v680, -1e+30
    %v1217 = vsel %vm210, %v1213, -inf
    %v1218 = vsel %vm210, %v1214, -inf
    %v1219 = vsel %vm210, %v1215, -inf
    %v1220 = vsel %vm210, %v1216, -inf
    %v1221 = vmax.f32 %v1217, %v1218
    %v1222 = vmax.f32 %v1219, %v1220
    %v1223 = vmax.f32 %v1221, %v1222
    %v1224 = vrot.slane %v1223, 4
    %v1225 = vmax.f32 %v1223, %v1224
    %v1226 = vrot.slane %v1225, 2
    %v1227 = vmax.f32 %v1225, %v1226
    %v1228 = vrot.slane %v1227, 1
    %v1229 = vmax.f32 %v1227, %v1228
    %v1230 = vsel %vm941, %v671, -1e+30
    %v1231 = vsel %vm942, %v674, -1e+30
    %v1232 = vsel %vm943, %v677, -1e+30
    %v1233 = vsel %vm944, %v680, -1e+30
    %v1234 = vsel %vm210, %v1230, -inf
    %v1235 = vsel %vm210, %v1231, -inf
    %v1236 = vsel %vm210, %v1232, -inf
    %v1237 = vsel %vm210, %v1233, -inf
    %v1238 = vmax.f32 %v1234, %v1235
    %v1239 = vmax.f32 %v1236, %v1237
    %v1240 = vmax.f32 %v1238, %v1239
    %v1241 = vrot.slane %v1240, 4
    %v1242 = vmax.f32 %v1240, %v1241
    %v1243 = vrot.slane %v1242, 2
    %v1244 = vmax.f32 %v1242, %v1243
    %v1245 = vrot.slane %v1244, 1
    %v1246 = vmax.f32 %v1244, %v1245
    %v1247 = vsel %vm962, %v1127, %v1144
    %v1248 = vsel %vm964, %v1247, %v1161
    %v1249 = vsel %vm966, %v1248, %v1178
    %v1250 = vsel %vm968, %v1249, %v1195
    %v1251 = vsel %vm970, %v1250, %v1212
    %v1252 = vsel %vm972, %v1251, %v1229
    %v1253 = vsel %vm974, %v1252, %v1246
    %1254 = vmatpush.msra.mxu0 0.0
    %1255 = vmatpush.msra.mxu0 0.0
    %1256 = vmatpush.msra.mxu0 0.0
    %1257 = vmatpush.msra.mxu0 0.0
    %1258 = vmatpush.msra.mxu0 0.0
    %1259 = vmatpush.msra.mxu0 0.0
    %1260 = vmatpush.msra.mxu0 0.0
    %1261 = vmatpush.msra.mxu0 0.0
    %1262 = vmatpush.msra.mxu0 0.0
    %1263 = vmatpush.msra.mxu0 0.0
    %1264 = vmatpush.msra.mxu0 0.0
    %1265 = vmatpush.msra.mxu0 0.0
    %1266 = vmatpush.msra.mxu0 0.0
    %1267 = vmatpush.msra.mxu0 0.0
    %1268 = vmatpush.msra.mxu0 0.0
    %1269 = vmatpush.msra.mxu0 %v1253
    %1270 = vmatmul.f32.gmra.mxu0 %v977
    %v1271 = vpop.f32.mrf.mxu0
    %v1272 = vadd.f32 0.0, %v1271
    %1273 = vmatmul.f32.gmra.mxu0 %v980
    %v1274 = vpop.f32.mrf.mxu0
    %v1275 = vadd.f32 0.0, %v1274
    %1276 = vmatmul.f32.gmra.mxu0 %v983
    %v1277 = vpop.f32.mrf.mxu0
    %v1278 = vadd.f32 0.0, %v1277
    %1279 = vmatmul.f32.gmra.mxu0 %v986
    %v1280 = vpop.f32.mrf.mxu0
    %v1281 = vadd.f32 0.0, %v1280
    %1282 = vdwg.mxu0
    %v1283 = vsub.f32 %v671, %v1272
    %v1284 = vsub.f32 %v674, %v1275
    %v1285 = vsub.f32 %v677, %v1278
    %v1286 = vsub.f32 %v680, %v1281
    %v1287 = vmul.f32 %v1283, 1.442695
    %v1288 = vpow.pop %v1287
    %v1289 = vmul.f32 %v1284, 1.442695
    %v1290 = vpow.pop %v1289
    %v1291 = vmul.f32 %v1285, 1.442695
    %v1292 = vpow.pop %v1291
    %v1293 = vmul.f32 %v1286, 1.442695
    %v1294 = vpow.pop %v1293
    %1295 = vmatpush.msra.mxu0 0.0
    %1296 = vmatpush.msra.mxu0 0.0
    %1297 = vmatpush.msra.mxu0 0.0
    %1298 = vmatpush.msra.mxu0 0.0
    %1299 = vmatpush.msra.mxu0 0.0
    %1300 = vmatpush.msra.mxu0 0.0
    %1301 = vmatpush.msra.mxu0 0.0
    %1302 = vmatpush.msra.mxu0 0.0
    %1303 = vmatpush.msra.mxu0 0.0
    %1304 = vmatpush.msra.mxu0 0.0
    %1305 = vmatpush.msra.mxu0 0.0
    %1306 = vmatpush.msra.mxu0 0.0
    %1307 = vmatpush.msra.mxu0 %v1294
    %1308 = vmatpush.msra.mxu0 %v1292
    %1309 = vmatpush.msra.mxu0 %v1290
    %1310 = vmatpush.msra.mxu0 %v1288
    %1311 = vmatmul.f32.gmra.mxu0 %v1062
    %v1312 = vpop.f32.mrf.mxu0
    %v1313 = vadd.f32 1e-16, %v1312
    %1314 = vdwg.mxu0
    %v1315 = vmul.f32 %v1288, %v686
    %v1316 = vmul.f32 %v1290, %v687
    %v1317 = vmul.f32 %v1292, %v688
    %v1318 = vmul.f32 %v1294, %v689
    %1319 = vmatpush.msra.mxu0 0.0
    %1320 = vmatpush.msra.mxu0 0.0
    %1321 = vmatpush.msra.mxu0 0.0
    %1322 = vmatpush.msra.mxu0 0.0
    %1323 = vmatpush.msra.mxu0 0.0
    %1324 = vmatpush.msra.mxu0 0.0
    %1325 = vmatpush.msra.mxu0 0.0
    %1326 = vmatpush.msra.mxu0 0.0
    %1327 = vmatpush.msra.mxu0 0.0
    %1328 = vmatpush.msra.mxu0 0.0
    %1329 = vmatpush.msra.mxu0 0.0
    %1330 = vmatpush.msra.mxu0 0.0
    %1331 = vmatpush.msra.mxu0 %v1318
    %1332 = vmatpush.msra.mxu0 %v1317
    %1333 = vmatpush.msra.mxu0 %v1316
    %1334 = vmatpush.msra.mxu0 %v1315
    %1335 = vmatmul.f32.gmra.mxu0 %v1062
    %v1336 = vpop.f32.mrf.mxu0
    %v1337 = vadd.f32 0.0, %v1336
    %1338 = vdwg.mxu0
    %v1339 = vrcp.pop %v1313
    %v1340 = vmul.f32 %v1337, %v1339
    %v1341 = vmax.f32 %v1340, 0.0
    %v1342 = vld [vmem:[%s17] sm:$0xff]
    %v1343 = vld [vmem:[%s17 + $0x8] sm:$0xff]
    %v1344 = vld [vmem:[%s17 + $0x10] sm:$0xff]
    %v1345 = vld [vmem:[%s17 + $0x18] sm:$0xff]
    %v1346 = vld [vmem:[%s18] sm:$0xff]
    %v1347 = vld [vmem:[%s18 + $0x8] sm:$0xff]
    %v1348 = vld [vmem:[%s18 + $0x10] sm:$0xff]
    %v1349 = vld [vmem:[%s18 + $0x18] sm:$0xff]
    %v1351 = vsel %vm210, %v1341, 0
    %1353 = vmatpush.msra.mxu0 0.0
    %1354 = vmatpush.msra.mxu0 0.0
    %1355 = vmatpush.msra.mxu0 0.0
    %1356 = vmatpush.msra.mxu0 0.0
    %1357 = vmatpush.msra.mxu0 0.0
    %1358 = vmatpush.msra.mxu0 0.0
    %1359 = vmatpush.msra.mxu0 0.0
    %1360 = vmatpush.msra.mxu0 0.0
    %1361 = vmatpush.msra.mxu0 0.0
    %1362 = vmatpush.msra.mxu0 0.0
    %1363 = vmatpush.msra.mxu0 0.0
    %1364 = vmatpush.msra.mxu0 0.0
    %1365 = vmatpush.msra.mxu0 %v1349
    %1366 = vmatpush.msra.mxu0 %v1348
    %1367 = vmatpush.msra.mxu0 %v1347
    %1368 = vmatpush.msra.mxu0 %v1346
    %1369 = vmatmul.f32.gmra.mxu0 %v1351
    %v1370 = vpop.f32.mrf.mxu0
    %v1371 = vadd.f32 0.0, %v1370
    %1372 = vdwg.mxu0
    %v1374 = vsel %vm210, %v1110, 0
    %1376 = vmatpush.msra.mxu0 0.0
    %1377 = vmatpush.msra.mxu0 0.0
    %1378 = vmatpush.msra.mxu0 0.0
    %1379 = vmatpush.msra.mxu0 0.0
    %1380 = vmatpush.msra.mxu0 0.0
    %1381 = vmatpush.msra.mxu0 0.0
    %1382 = vmatpush.msra.mxu0 0.0
    %1383 = vmatpush.msra.mxu0 0.0
    %1384 = vmatpush.msra.mxu0 0.0
    %1385 = vmatpush.msra.mxu0 0.0
    %1386 = vmatpush.msra.mxu0 0.0
    %1387 = vmatpush.msra.mxu0 0.0
    %1388 = vmatpush.msra.mxu0 %v1345
    %1389 = vmatpush.msra.mxu0 %v1344
    %1390 = vmatpush.msra.mxu0 %v1343
    %1391 = vmatpush.msra.mxu0 %v1342
    %1392 = vmatmul.f32.gmra.mxu0 %v1374
    %v1393 = vpop.f32.mrf.mxu0
    %v1394 = vadd.f32 %v1371, %v1393
    %1395 = vdwg.mxu0
    %v1396 = vld [vmem:[%s19] sm:$0x1]
    %v1398 = vperm.slane %v1396, 0
    %v1400 = vadd.f32 %v1394, %v1398
    %v1401 = vmax.f32 %v1400, 0.0
    %v1402 = vld [vmem:[%s4] sm:$0xff]
    %1404 = vset.pattern.permute.xlu0 0
    %1405 = vperm.xlu0 %1404, %v1402
    %v1406 = vpop.permute.xlu0 %1405
    %v1408 = vmul.f32 %v1401, %v1406
    %1409 = vst.msk [vmem:[#allocation2] sm:$0xff] %vm210, %v1408
    // Predicated region
    $region82: #{encoder_forward.1} parent=1 // pred_check
      _
    $region83: #{encoder_forward.1} parent=1 // pred_check_branch
      %1411 = sbr.rel (0) target = $region85
    $region84: #{encoder_forward.1} parent=1 // pred_region
      %1413 = vsyncadd [#allocation3], 0
      %s1415 = sshll.u32 [#allocation2], 4
      %s1416 = int_to_ptr.vmem [resolvable:$true] %s1415
      %s1417 = sshll.u32 %s20, 4
      %s1418 = int_to_ptr.hbm [resolvable:$true] %s1417
      %1420 = dma.vmem_to_hbm [thread:$0]  %s1416, 128, %s1418, [#allocation3]
    $region85: #{encoder_forward.1} parent=1 // pred_fallthru
      _
    // Predicated region
    $region86: #{encoder_forward.1} parent=1 // pred_check
      _
    $region87: #{encoder_forward.1} parent=1 // pred_check_branch
      %1422 = sbr.rel (0) target = $region89
    $region88: #{encoder_forward.1} parent=1 // pred_region
      %1424 = dma.done [#allocation3], 128
    $region89: #{encoder_forward.1} parent=1 // pred_fallthru
      _
    %1425 = vsyncpa [#allocation3], 1

</llo_original>
